<compile_context>
chip_gen: v7x
topology: tpu7x:2x2x1
jax: 0.10.0
libtpu: 0.0.40
codegen_flags: <defaults>
</compile_context>

<pallas_src>
import numpy as np
import jax
import jax.numpy as jnp
from jax import lax
from jax.experimental import pallas as pl
from jax.experimental.pallas import tpu as pltpu

# ---------------- config (small shapes consistent with the module) ----------------
B = 2              # batch
NVIEWS = 2         # number of camera views
NBINS = 16         # number of queries (bins)
D_MODEL = 128      # d_model
N_HEADS = 8
HEAD_DIM = D_MODEL // N_HEADS      # 16
D_FFN = 256
SPACE_SIZE = (8.0, 8.0, 2.0)
SPACE_CENTER = (0.0, 0.0, 1.0)
EPS = 1e-5         # nn.LayerNorm default

ROWS = B * NBINS                   # 32 rows through every dense matmul
SEG = N_HEADS * NBINS              # 128 score lanes per batch (head-major)

# Block-diagonal head-segment mask (host-built constant, passed as an input):
#   BLK[h*NBINS + n, g*HEAD_DIM + d] = 1.0 iff h == g
_BLK_DIAG = np.kron(np.eye(N_HEADS, dtype=np.float32),
                    np.ones((NBINS, HEAD_DIM), dtype=np.float32))   # (SEG, D_MODEL)


# ---------------- in-kernel helpers ----------------
def _layernorm(x, gamma, beta):
    mu = jnp.mean(x, axis=-1, keepdims=True)
    var = jnp.mean(jnp.square(x - mu), axis=-1, keepdims=True)
    return (x - mu) * lax.rsqrt(var + EPS) * gamma + beta


# ---------------- fused kernel: self-attn+norm2 -> masked-mean fusion+norm1 -> FFN+norm3 ----------------
def mvp_layer_kernel(tgt_ref, pos_ref, t2v_ref, bm_ref, blk_ref,
                     wq_ref, bq_ref, wk_ref, bk_ref, wv_ref, bv_ref,
                     wo_ref, bo_ref, g2_ref, be2_ref,
                     g1_ref, be1_ref,
                     w1_ref, b1_ref, w2_ref, b2_ref, g3_ref, be3_ref,
                     out_ref):
    f32 = jnp.float32
    bf16 = jnp.bfloat16

    blk = blk_ref[...]                       # (SEG, D_MODEL) f32 block-diag ones
    blk_bf = blk.astype(bf16)                # hoisted: reused per batch

    # ---- self-attention (1/sqrt(head_dim) already folded into wq/bq) ----
    x = tgt_ref[...]                         # (ROWS, D_MODEL) f32
    qk = (x + pos_ref[...]).astype(bf16)     # with_pos_embed(tgt, query_pos)
    x_bf = x.astype(bf16)

    q = jnp.dot(qk, wq_ref[...], preferred_element_type=f32) + bq_ref[...]
    k = jnp.dot(qk, wk_ref[...], preferred_element_type=f32) + bk_ref[...]
    v = jnp.dot(x_bf, wv_ref[...], preferred_element_type=f32) + bv_ref[...]

    outs = []
    for b in range(B):                       # static unroll, B=2
        rs = slice(b * NBINS, (b + 1) * NBINS)
        qb = q[rs].astype(bf16)              # (NBINS, D_MODEL)
        # tile keys/values over the head-row blocks, keep diagonal blocks only
        kblk = (jnp.concatenate([k[rs]] * N_HEADS, axis=0) * blk).astype(bf16)  # (SEG, D_MODEL)
        vblk = (jnp.concatenate([v[rs]] * N_HEADS, axis=0) * blk).astype(bf16)  # (SEG, D_MODEL)
        # scores (NBINS, SEG): column h*NBINS+n == <q_h[row], k_h[n]>  (no mask needed)
        s = lax.dot_general(qb, kblk, (((1,), (1,)), ((), ())),
                            preferred_element_type=f32)
        # global row max is constant within every head segment -> valid stabiliser
        e = jnp.exp(s - jnp.max(s, axis=-1, keepdims=True))
        e_bf = e.astype(bf16)
        num = jnp.dot(e_bf, vblk, preferred_element_type=f32)     # (NBINS, D_MODEL) concat-head
        den = jnp.dot(e_bf, blk_bf, preferred_element_type=f32)   # per-head sums, lane-broadcast
        outs.append(num / den)               # exact divide (softmax-normalised attn output)
    attn = jnp.concatenate(outs, axis=0)     # (ROWS, D_MODEL)

    tgt2 = jnp.dot(attn.astype(bf16), wo_ref[...],
                   preferred_element_type=f32) + bo_ref[...]
    tgt_sa = _layernorm(x + tgt2, g2_ref[...], be2_ref[...])       # dropout2 = identity

    # ---- bounding-masked mean fusion over views + norm1 (1/NVIEWS folded into bm) ----
    fused = t2v_ref[0] * bm_ref[:, 0:1]
    for vw in range(1, NVIEWS):
        fused = fused + t2v_ref[vw] * bm_ref[:, vw:vw + 1]
    tgt_f = _layernorm(tgt_sa + fused, g1_ref[...], be1_ref[...])  # dropout1 = identity

    # ---- FFN + residual + norm3 ----
    h = jnp.dot(tgt_f.astype(bf16), w1_ref[...], preferred_element_type=f32) + b1_ref[...]
    h = jnp.maximum(h, 0.0)                                        # activation='relu'
    y2 = jnp.dot(h.astype(bf16), w2_ref[...], preferred_element_type=f32) + b2_ref[...]
    out_ref[...] = _layernorm(tgt_f + y2, g3_ref[...], be3_ref[...])  # dropout3/4 = identity


# ---------------- pallas_call wrapper (no grid; whole problem resident in VMEM) ----------------
def mvp_layer_pallas(tgt2d, pos2d, t2v, bm, kp):
    blk = jnp.asarray(_BLK_DIAG)
    args = (tgt2d, pos2d, t2v, bm, blk,
            kp['wq'], kp['bq'], kp['wk'], kp['bk'], kp['wv'], kp['bv'],
            kp['wo'], kp['bo'], kp['g2'], kp['be2'],
            kp['g1'], kp['be1'],
            kp['w1'], kp['b1'], kp['w2'], kp['b2'], kp['g3'], kp['be3'])
    vmem = lambda: pl.BlockSpec(memory_space=pltpu.MemorySpace.VMEM)
    return pl.pallas_call(
        mvp_layer_kernel,
        out_shape=jax.ShapeDtypeStruct((ROWS, D_MODEL), jnp.float32),
        in_specs=[vmem() for _ in args],
        out_specs=vmem(),
    )(*args)


# ---------------- full forward (plain-JAX geometry glue + one fused kernel) ----------------
def mvp_decoder_layer_forward(tgt, query_pos, reference_points, proj_attn_out,
                              R_cam, T_cam, f, c, center, scale, kp):
    # norm2absolute + camera projection of (detached) reference points -> bounding mask
    grid_size = jnp.array(SPACE_SIZE, jnp.float32)
    grid_center = jnp.array(SPACE_CENTER, jnp.float32)
    ref = jnp.broadcast_to(reference_points[:, None],
                           (B, NVIEWS, NBINS, 1, 3)).reshape(B, NVIEWS, NBINS, 3)
    ref_abs = ref * grid_size + grid_center - grid_size / 2.0
    # TODO(synk): cameras.project_pose_batch lens-distortion terms (k, p) not reproduced; pure pinhole.
    xcam = jnp.einsum('bvij,bvnj->bvni', R_cam, ref_abs - T_cam)
    proj2d = xcam[..., :2] / xcam[..., 2:3] * f + c               # (B, NVIEWS, NBINS, 2)
    wh = center * 2.0                                             # (B, NVIEWS, 2)
    bounding = ((proj2d[..., 0] >= 0) & (proj2d[..., 1] >= 0)
                & (proj2d[..., 0] < wh[..., 0:1]) & (proj2d[..., 1] < wh[..., 1:2]))
    # TODO(synk): get_transform/do_transform_batch + clamp only feed ProjAttn's sampling
    #             locations; ProjAttn itself is not defined in the reference, so its per-view
    #             output is taken as an input tensor (proj_attn_out) instead of recomputed.
    # TODO(synk): meta[...]['padding'] -> bounding[:, view] = False not reproduced (no padding here).

    # view-major ProjAttn features; compact (ROWS, NVIEWS) mask with 1/NVIEWS folded in
    t2v = (proj_attn_out.reshape(B, NVIEWS, NBINS, D_MODEL)
           .transpose(1, 0, 2, 3).reshape(NVIEWS, ROWS, D_MODEL))
    bm = (bounding.transpose(0, 2, 1).reshape(ROWS, NVIEWS).astype(jnp.float32)
          * (1.0 / NVIEWS))

    out2d = mvp_layer_pallas(tgt.reshape(ROWS, D_MODEL),
                             query_pos.reshape(ROWS, D_MODEL),
                             t2v, bm, kp)
    return out2d.reshape(B, NBINS, D_MODEL)


# ---------------- pure-JAX f32 reference (module semantics, for the correctness check) ----------------
def reference_forward(tgt, query_pos, reference_points, proj_attn_out,
                      R_cam, T_cam, f, c, center, scale, p):
    def ln(x, g, b):
        mu = x.mean(-1, keepdims=True)
        var = ((x - mu) ** 2).mean(-1, keepdims=True)
        return (x - mu) / jnp.sqrt(var + EPS) * g + b

    qk = tgt + query_pos
    q = qk @ p['wq'] + p['bq']; k = qk @ p['wk'] + p['bk']; v = tgt @ p['wv'] + p['bv']
    split = lambda t: t.reshape(B, NBINS, N_HEADS, HEAD_DIM).transpose(0, 2, 1, 3)
    qh, kh, vh = split(q), split(k), split(v)
    s = jnp.einsum('bhqd,bhkd->bhqk', qh, kh) / np.sqrt(HEAD_DIM)
    a = jax.nn.softmax(s, axis=-1)
    o = jnp.einsum('bhqk,bhkd->bhqd', a, vh).transpose(0, 2, 1, 3).reshape(B, NBINS, D_MODEL)
    tgt_sa = ln(tgt + (o @ p['wo'] + p['bo']), p['g2'], p['be2'])

    grid_size = jnp.array(SPACE_SIZE, jnp.float32)
    grid_center = jnp.array(SPACE_CENTER, jnp.float32)
    ref = jnp.broadcast_to(reference_points[:, None],
                           (B, NVIEWS, NBINS, 1, 3)).reshape(B, NVIEWS, NBINS, 3)
    ref_abs = ref * grid_size + grid_center - grid_size / 2.0
    xcam = jnp.einsum('bvij,bvnj->bvni', R_cam, ref_abs - T_cam)
    proj2d = xcam[..., :2] / xcam[..., 2:3] * f + c
    wh = center * 2.0
    bounding = ((proj2d[..., 0] >= 0) & (proj2d[..., 1] >= 0)
                & (proj2d[..., 0] < wh[..., 0:1]) & (proj2d[..., 1] < wh[..., 1:2]))
    t2 = proj_attn_out.reshape(B, NVIEWS, NBINS, D_MODEL) * bounding[..., None].astype(jnp.float32)
    tgt_f = ln(tgt_sa + t2.mean(1), p['g1'], p['be1'])
    h = jnp.maximum(tgt_f @ p['w1'] + p['b1'], 0.0)
    return ln(tgt_f + (h @ p['w2'] + p['b2']), p['g3'], p['be3'])


# ---------------- parameters ----------------
def init_params(key):
    ks = jax.random.split(key, 18)
    w = lambda i, shape, s=0.05: jax.random.normal(ks[i], shape, jnp.float32) * s
    return dict(
        wq=w(0, (D_MODEL, D_MODEL)), bq=w(1, (1, D_MODEL)),
        wk=w(2, (D_MODEL, D_MODEL)), bk=w(3, (1, D_MODEL)),
        wv=w(4, (D_MODEL, D_MODEL)), bv=w(5, (1, D_MODEL)),
        wo=w(6, (D_MODEL, D_MODEL)), bo=w(7, (1, D_MODEL)),
        g2=1.0 + w(8, (1, D_MODEL)),  be2=w(9, (1, D_MODEL)),
        g1=1.0 + w(10, (1, D_MODEL)), be1=w(11, (1, D_MODEL)),
        w1=w(12, (D_MODEL, D_FFN)),   b1=w(13, (1, D_FFN)),
        w2=w(14, (D_FFN, D_MODEL)),   b2=w(15, (1, D_MODEL)),
        g3=1.0 + w(16, (1, D_MODEL)), be3=w(17, (1, D_MODEL)),
    )


def prepare_kernel_params(p):
    """Kernel-side params: 1/sqrt(head_dim) folded into Wq/bq, matmul weights in bf16."""
    scale = 1.0 / np.sqrt(HEAD_DIM)
    bf = lambda a: a.astype(jnp.bfloat16)
    return dict(
        wq=bf(p['wq'] * scale), bq=p['bq'] * scale,
        wk=bf(p['wk']), bk=p['bk'],
        wv=bf(p['wv']), bv=p['bv'],
        wo=bf(p['wo']), bo=p['bo'],
        w1=bf(p['w1']), b1=p['b1'],
        w2=bf(p['w2']), b2=p['b2'],
        g1=p['g1'], be1=p['be1'],
        g2=p['g2'], be2=p['be2'],
        g3=p['g3'], be3=p['be3'],
    )


if __name__ == "__main__":
    key = jax.random.PRNGKey(0)
    kp_key, kd = jax.random.split(key)
    p = init_params(kp_key)
    kp = prepare_kernel_params(p)
    ks = jax.random.split(kd, 8)

    tgt = jax.random.normal(ks[0], (B, NBINS, D_MODEL), jnp.float32)
    query_pos = jax.random.normal(ks[1], (B, NBINS, D_MODEL), jnp.float32)
    reference_points = jax.random.uniform(ks[2], (B, NBINS, 1, 3), jnp.float32)
    proj_attn_out = jax.random.normal(ks[3], (B * NVIEWS, NBINS, D_MODEL), jnp.float32)

    # synthetic camera meta (deterministic): identity rotation, camera behind the grid
    R_cam = jnp.broadcast_to(jnp.eye(3, dtype=jnp.float32), (B, NVIEWS, 3, 3))
    T_cam = (jnp.broadcast_to(jnp.array([0.0, 0.0, -6.0], jnp.float32), (B, NVIEWS, 1, 3))
             + 0.1 * jax.random.normal(ks[4], (B, NVIEWS, 1, 3), jnp.float32))
    f = 200.0 + 10.0 * jax.random.normal(ks[5], (B, NVIEWS, 1, 2), jnp.float32)
    c = 128.0 + 5.0 * jax.random.normal(ks[6], (B, NVIEWS, 1, 2), jnp.float32)
    center = jnp.full((B, NVIEWS, 2), 128.0, jnp.float32)
    scale = jnp.full((B, NVIEWS, 2), 1.28, jnp.float32)

    fwd = jax.jit(mvp_decoder_layer_forward)
    out = fwd(tgt, query_pos, reference_points, proj_attn_out,
              R_cam, T_cam, f, c, center, scale, kp)
    out = jax.block_until_ready(out)

    ref = reference_forward(tgt, query_pos, reference_points, proj_attn_out,
                            R_cam, T_cam, f, c, center, scale, p)
    # bf16 MXU operands (QKV / scores / probs / Wo / FFN) vs. the pure-f32 reference.
    np.testing.assert_allclose(np.asarray(out), np.asarray(ref), atol=2e-2, rtol=2e-2)

    print("KERNEL_OK")
</pallas_src>

<mosaic_0001>
module attributes {stable_mosaic.version = 11 : i64} {
  func.func @mvp_layer_kernel(%arg0: memref<32x128xf32, #tpu.memory_space<vmem>>, %arg1: memref<32x128xf32, #tpu.memory_space<vmem>>, %arg2: memref<2x32x128xf32, #tpu.memory_space<vmem>>, %arg3: memref<32x2xf32, #tpu.memory_space<vmem>>, %arg4: memref<128x128xf32, #tpu.memory_space<vmem>>, %arg5: memref<128x128xbf16, #tpu.memory_space<vmem>>, %arg6: memref<1x128xf32, #tpu.memory_space<vmem>>, %arg7: memref<128x128xbf16, #tpu.memory_space<vmem>>, %arg8: memref<1x128xf32, #tpu.memory_space<vmem>>, %arg9: memref<128x128xbf16, #tpu.memory_space<vmem>>, %arg10: memref<1x128xf32, #tpu.memory_space<vmem>>, %arg11: memref<128x128xbf16, #tpu.memory_space<vmem>>, %arg12: memref<1x128xf32, #tpu.memory_space<vmem>>, %arg13: memref<1x128xf32, #tpu.memory_space<vmem>>, %arg14: memref<1x128xf32, #tpu.memory_space<vmem>>, %arg15: memref<1x128xf32, #tpu.memory_space<vmem>>, %arg16: memref<1x128xf32, #tpu.memory_space<vmem>>, %arg17: memref<128x256xbf16, #tpu.memory_space<vmem>>, %arg18: memref<1x256xf32, #tpu.memory_space<vmem>>, %arg19: memref<256x128xbf16, #tpu.memory_space<vmem>>, %arg20: memref<1x128xf32, #tpu.memory_space<vmem>>, %arg21: memref<1x128xf32, #tpu.memory_space<vmem>>, %arg22: memref<1x128xf32, #tpu.memory_space<vmem>>, %arg23: memref<32x128xf32, #tpu.memory_space<vmem>>) attributes {dimension_semantics = [], scalar_prefetch = 0 : i64, scratch_operands = 0 : i64, tpu.core_type = #tpu.core_type<tc>} {
    %c0 = arith.constant 0 : index
    %c0_0 = arith.constant 0 : index
    %0 = vector.load %arg4[%c0, %c0_0] : memref<128x128xf32, #tpu.memory_space<vmem>>, vector<128x128xf32>
    %1 = arith.truncf %0 : vector<128x128xf32> to vector<128x128xbf16>
    %c0_1 = arith.constant 0 : index
    %c0_2 = arith.constant 0 : index
    %2 = vector.load %arg0[%c0_1, %c0_2] : memref<32x128xf32, #tpu.memory_space<vmem>>, vector<32x128xf32>
    %c0_3 = arith.constant 0 : index
    %c0_4 = arith.constant 0 : index
    %3 = vector.load %arg1[%c0_3, %c0_4] : memref<32x128xf32, #tpu.memory_space<vmem>>, vector<32x128xf32>
    %4 = arith.addf %2, %3 : vector<32x128xf32>
    %5 = arith.truncf %4 : vector<32x128xf32> to vector<32x128xbf16>
    %6 = arith.truncf %2 : vector<32x128xf32> to vector<32x128xbf16>
    %c0_5 = arith.constant 0 : index
    %c0_6 = arith.constant 0 : index
    %7 = vector.load %arg5[%c0_5, %c0_6] : memref<128x128xbf16, #tpu.memory_space<vmem>>, vector<128x128xbf16>
    %cst = arith.constant dense<0.000000e+00> : vector<32x128xf32>
    %8 = tpu.matmul %5, %7, %cst {dimension_numbers = #tpu.dot_dimension_numbers<[1], [0], [0], [1], [0, 0, 1, 1], [], []>} : vector<32x128xbf16>, vector<128x128xbf16>, vector<32x128xf32> -> vector<32x128xf32>
    %c0_7 = arith.constant 0 : index
    %c0_8 = arith.constant 0 : index
    %9 = vector.load %arg6[%c0_7, %c0_8] : memref<1x128xf32, #tpu.memory_space<vmem>>, vector<1x128xf32>
    %10 = vector.broadcast %9 : vector<1x128xf32> to vector<32x128xf32>
    %11 = arith.addf %8, %10 : vector<32x128xf32>
    %c0_9 = arith.constant 0 : index
    %c0_10 = arith.constant 0 : index
    %12 = vector.load %arg7[%c0_9, %c0_10] : memref<128x128xbf16, #tpu.memory_space<vmem>>, vector<128x128xbf16>
    %cst_11 = arith.constant dense<0.000000e+00> : vector<32x128xf32>
    %13 = tpu.matmul %5, %12, %cst_11 {dimension_numbers = #tpu.dot_dimension_numbers<[1], [0], [0], [1], [0, 0, 1, 1], [], []>} : vector<32x128xbf16>, vector<128x128xbf16>, vector<32x128xf32> -> vector<32x128xf32>
    %c0_12 = arith.constant 0 : index
    %c0_13 = arith.constant 0 : index
    %14 = vector.load %arg8[%c0_12, %c0_13] : memref<1x128xf32, #tpu.memory_space<vmem>>, vector<1x128xf32>
    %15 = vector.broadcast %14 : vector<1x128xf32> to vector<32x128xf32>
    %16 = arith.addf %13, %15 : vector<32x128xf32>
    %c0_14 = arith.constant 0 : index
    %c0_15 = arith.constant 0 : index
    %17 = vector.load %arg9[%c0_14, %c0_15] : memref<128x128xbf16, #tpu.memory_space<vmem>>, vector<128x128xbf16>
    %cst_16 = arith.constant dense<0.000000e+00> : vector<32x128xf32>
    %18 = tpu.matmul %6, %17, %cst_16 {dimension_numbers = #tpu.dot_dimension_numbers<[1], [0], [0], [1], [0, 0, 1, 1], [], []>} : vector<32x128xbf16>, vector<128x128xbf16>, vector<32x128xf32> -> vector<32x128xf32>
    %c0_17 = arith.constant 0 : index
    %c0_18 = arith.constant 0 : index
    %19 = vector.load %arg10[%c0_17, %c0_18] : memref<1x128xf32, #tpu.memory_space<vmem>>, vector<1x128xf32>
    %20 = vector.broadcast %19 : vector<1x128xf32> to vector<32x128xf32>
    %21 = arith.addf %18, %20 : vector<32x128xf32>
    %22 = vector.extract_strided_slice %11 {offsets = [0, 0], sizes = [16, 128], strides = [1, 1]} : vector<32x128xf32> to vector<16x128xf32>
    %23 = arith.truncf %22 : vector<16x128xf32> to vector<16x128xbf16>
    %24 = vector.extract_strided_slice %16 {offsets = [0, 0], sizes = [16, 128], strides = [1, 1]} : vector<32x128xf32> to vector<16x128xf32>
    %25 = tpu.concatenate %24, %24, %24, %24, %24, %24, %24, %24 in 0 : vector<16x128xf32>, vector<16x128xf32>, vector<16x128xf32>, vector<16x128xf32>, vector<16x128xf32>, vector<16x128xf32>, vector<16x128xf32>, vector<16x128xf32> -> vector<128x128xf32>
    %26 = arith.mulf %25, %0 : vector<128x128xf32>
    %27 = arith.truncf %26 : vector<128x128xf32> to vector<128x128xbf16>
    %28 = vector.extract_strided_slice %21 {offsets = [0, 0], sizes = [16, 128], strides = [1, 1]} : vector<32x128xf32> to vector<16x128xf32>
    %29 = tpu.concatenate %28, %28, %28, %28, %28, %28, %28, %28 in 0 : vector<16x128xf32>, vector<16x128xf32>, vector<16x128xf32>, vector<16x128xf32>, vector<16x128xf32>, vector<16x128xf32>, vector<16x128xf32>, vector<16x128xf32> -> vector<128x128xf32>
    %30 = arith.mulf %29, %0 : vector<128x128xf32>
    %31 = arith.truncf %30 : vector<128x128xf32> to vector<128x128xbf16>
    %cst_19 = arith.constant dense<0.000000e+00> : vector<16x128xf32>
    %32 = tpu.matmul %23, %27, %cst_19 {dimension_numbers = #tpu.dot_dimension_numbers<[1], [1], [0], [0], [0, 0, 1, 0], [], []>} : vector<16x128xbf16>, vector<128x128xbf16>, vector<16x128xf32> -> vector<16x128xf32>
    %cst_20 = arith.constant dense<0xFF800000> : vector<16xf32>
    %33 = vector.multi_reduction <maximumf>, %32, %cst_20 [1] : vector<16x128xf32> to vector<16xf32>
    %34 = vector.shape_cast %33 : vector<16xf32> to vector<16x1xf32>
    %35 = vector.broadcast %34 : vector<16x1xf32> to vector<16x128xf32>
    %36 = arith.subf %32, %35 : vector<16x128xf32>
    %37 = math.exp %36 : vector<16x128xf32>
    %38 = arith.truncf %37 : vector<16x128xf32> to vector<16x128xbf16>
    %cst_21 = arith.constant dense<0.000000e+00> : vector<16x128xf32>
    %39 = tpu.matmul %38, %31, %cst_21 {dimension_numbers = #tpu.dot_dimension_numbers<[1], [0], [0], [1], [0, 0, 1, 1], [], []>} : vector<16x128xbf16>, vector<128x128xbf16>, vector<16x128xf32> -> vector<16x128xf32>
    %cst_22 = arith.constant dense<0.000000e+00> : vector<16x128xf32>
    %40 = tpu.matmul %38, %1, %cst_22 {dimension_numbers = #tpu.dot_dimension_numbers<[1], [0], [0], [1], [0, 0, 1, 1], [], []>} : vector<16x128xbf16>, vector<128x128xbf16>, vector<16x128xf32> -> vector<16x128xf32>
    %41 = arith.divf %39, %40 : vector<16x128xf32>
    %42 = vector.extract_strided_slice %11 {offsets = [16, 0], sizes = [16, 128], strides = [1, 1]} : vector<32x128xf32> to vector<16x128xf32>
    %43 = arith.truncf %42 : vector<16x128xf32> to vector<16x128xbf16>
    %44 = vector.extract_strided_slice %16 {offsets = [16, 0], sizes = [16, 128], strides = [1, 1]} : vector<32x128xf32> to vector<16x128xf32>
    %45 = tpu.concatenate %44, %44, %44, %44, %44, %44, %44, %44 in 0 : vector<16x128xf32>, vector<16x128xf32>, vector<16x128xf32>, vector<16x128xf32>, vector<16x128xf32>, vector<16x128xf32>, vector<16x128xf32>, vector<16x128xf32> -> vector<128x128xf32>
    %46 = arith.mulf %45, %0 : vector<128x128xf32>
    %47 = arith.truncf %46 : vector<128x128xf32> to vector<128x128xbf16>
    %48 = vector.extract_strided_slice %21 {offsets = [16, 0], sizes = [16, 128], strides = [1, 1]} : vector<32x128xf32> to vector<16x128xf32>
    %49 = tpu.concatenate %48, %48, %48, %48, %48, %48, %48, %48 in 0 : vector<16x128xf32>, vector<16x128xf32>, vector<16x128xf32>, vector<16x128xf32>, vector<16x128xf32>, vector<16x128xf32>, vector<16x128xf32>, vector<16x128xf32> -> vector<128x128xf32>
    %50 = arith.mulf %49, %0 : vector<128x128xf32>
    %51 = arith.truncf %50 : vector<128x128xf32> to vector<128x128xbf16>
    %cst_23 = arith.constant dense<0.000000e+00> : vector<16x128xf32>
    %52 = tpu.matmul %43, %47, %cst_23 {dimension_numbers = #tpu.dot_dimension_numbers<[1], [1], [0], [0], [0, 0, 1, 0], [], []>} : vector<16x128xbf16>, vector<128x128xbf16>, vector<16x128xf32> -> vector<16x128xf32>
    %cst_24 = arith.constant dense<0xFF800000> : vector<16xf32>
    %53 = vector.multi_reduction <maximumf>, %52, %cst_24 [1] : vector<16x128xf32> to vector<16xf32>
    %54 = vector.shape_cast %53 : vector<16xf32> to vector<16x1xf32>
    %55 = vector.broadcast %54 : vector<16x1xf32> to vector<16x128xf32>
    %56 = arith.subf %52, %55 : vector<16x128xf32>
    %57 = math.exp %56 : vector<16x128xf32>
    %58 = arith.truncf %57 : vector<16x128xf32> to vector<16x128xbf16>
    %cst_25 = arith.constant dense<0.000000e+00> : vector<16x128xf32>
    %59 = tpu.matmul %58, %51, %cst_25 {dimension_numbers = #tpu.dot_dimension_numbers<[1], [0], [0], [1], [0, 0, 1, 1], [], []>} : vector<16x128xbf16>, vector<128x128xbf16>, vector<16x128xf32> -> vector<16x128xf32>
    %cst_26 = arith.constant dense<0.000000e+00> : vector<16x128xf32>
    %60 = tpu.matmul %58, %1, %cst_26 {dimension_numbers = #tpu.dot_dimension_numbers<[1], [0], [0], [1], [0, 0, 1, 1], [], []>} : vector<16x128xbf16>, vector<128x128xbf16>, vector<16x128xf32> -> vector<16x128xf32>
    %61 = arith.divf %59, %60 : vector<16x128xf32>
    %62 = tpu.concatenate %41, %61 in 0 : vector<16x128xf32>, vector<16x128xf32> -> vector<32x128xf32>
    %63 = arith.truncf %62 : vector<32x128xf32> to vector<32x128xbf16>
    %c0_27 = arith.constant 0 : index
    %c0_28 = arith.constant 0 : index
    %64 = vector.load %arg11[%c0_27, %c0_28] : memref<128x128xbf16, #tpu.memory_space<vmem>>, vector<128x128xbf16>
    %cst_29 = arith.constant dense<0.000000e+00> : vector<32x128xf32>
    %65 = tpu.matmul %63, %64, %cst_29 {dimension_numbers = #tpu.dot_dimension_numbers<[1], [0], [0], [1], [0, 0, 1, 1], [], []>} : vector<32x128xbf16>, vector<128x128xbf16>, vector<32x128xf32> -> vector<32x128xf32>
    %c0_30 = arith.constant 0 : index
    %c0_31 = arith.constant 0 : index
    %66 = vector.load %arg12[%c0_30, %c0_31] : memref<1x128xf32, #tpu.memory_space<vmem>>, vector<1x128xf32>
    %67 = vector.broadcast %66 : vector<1x128xf32> to vector<32x128xf32>
    %68 = arith.addf %65, %67 : vector<32x128xf32>
    %69 = arith.addf %2, %68 : vector<32x128xf32>
    %c0_32 = arith.constant 0 : index
    %c0_33 = arith.constant 0 : index
    %70 = vector.load %arg13[%c0_32, %c0_33] : memref<1x128xf32, #tpu.memory_space<vmem>>, vector<1x128xf32>
    %c0_34 = arith.constant 0 : index
    %c0_35 = arith.constant 0 : index
    %71 = vector.load %arg14[%c0_34, %c0_35] : memref<1x128xf32, #tpu.memory_space<vmem>>, vector<1x128xf32>
    %cst_36 = arith.constant dense<0.000000e+00> : vector<32xf32>
    %72 = vector.multi_reduction <add>, %69, %cst_36 [1] : vector<32x128xf32> to vector<32xf32>
    %73 = vector.shape_cast %72 : vector<32xf32> to vector<32x1xf32>
    %cst_37 = arith.constant 1.280000e+02 : f32
    %74 = vector.broadcast %cst_37 : f32 to vector<32x1xf32>
    %75 = arith.divf %73, %74 : vector<32x1xf32>
    %76 = vector.broadcast %75 : vector<32x1xf32> to vector<32x128xf32>
    %77 = arith.subf %69, %76 : vector<32x128xf32>
    %78 = arith.mulf %77, %77 : vector<32x128xf32>
    %cst_38 = arith.constant dense<0.000000e+00> : vector<32xf32>
    %79 = vector.multi_reduction <add>, %78, %cst_38 [1] : vector<32x128xf32> to vector<32xf32>
    %80 = vector.shape_cast %79 : vector<32xf32> to vector<32x1xf32>
    %cst_39 = arith.constant 1.280000e+02 : f32
    %81 = vector.broadcast %cst_39 : f32 to vector<32x1xf32>
    %82 = arith.divf %80, %81 : vector<32x1xf32>
    %83 = vector.broadcast %75 : vector<32x1xf32> to vector<32x128xf32>
    %84 = arith.subf %69, %83 : vector<32x128xf32>
    %cst_40 = arith.constant 9.99999974E-6 : f32
    %85 = vector.broadcast %cst_40 : f32 to vector<32x1xf32>
    %86 = arith.addf %82, %85 : vector<32x1xf32>
    %87 = math.rsqrt %86 : vector<32x1xf32>
    %88 = vector.broadcast %87 : vector<32x1xf32> to vector<32x128xf32>
    %89 = arith.mulf %84, %88 : vector<32x128xf32>
    %90 = vector.broadcast %70 : vector<1x128xf32> to vector<32x128xf32>
    %91 = arith.mulf %89, %90 : vector<32x128xf32>
    %92 = vector.broadcast %71 : vector<1x128xf32> to vector<32x128xf32>
    %93 = arith.addf %91, %92 : vector<32x128xf32>
    %c0_41 = arith.constant 0 : index
    %c0_42 = arith.constant 0 : index
    %c0_43 = arith.constant 0 : index
    %94 = vector.load %arg2[%c0_41, %c0_42, %c0_43] : memref<2x32x128xf32, #tpu.memory_space<vmem>>, vector<1x32x128xf32>
    %95 = vector.shape_cast %94 : vector<1x32x128xf32> to vector<32x128xf32>
    %c0_44 = arith.constant 0 : index
    %c0_45 = arith.constant 0 : index
    %96 = vector.load %arg3[%c0_44, %c0_45] : memref<32x2xf32, #tpu.memory_space<vmem>>, vector<32x1xf32>
    %97 = vector.broadcast %96 : vector<32x1xf32> to vector<32x128xf32>
    %98 = arith.mulf %95, %97 : vector<32x128xf32>
    %c1 = arith.constant 1 : index
    %c0_46 = arith.constant 0 : index
    %c0_47 = arith.constant 0 : index
    %99 = vector.load %arg2[%c1, %c0_46, %c0_47] : memref<2x32x128xf32, #tpu.memory_space<vmem>>, vector<1x32x128xf32>
    %100 = vector.shape_cast %99 : vector<1x32x128xf32> to vector<32x128xf32>
    %c0_48 = arith.constant 0 : index
    %c1_49 = arith.constant 1 : index
    %101 = vector.load %arg3[%c0_48, %c1_49] : memref<32x2xf32, #tpu.memory_space<vmem>>, vector<32x1xf32>
    %102 = vector.broadcast %101 : vector<32x1xf32> to vector<32x128xf32>
    %103 = arith.mulf %100, %102 : vector<32x128xf32>
    %104 = arith.addf %98, %103 : vector<32x128xf32>
    %105 = arith.addf %93, %104 : vector<32x128xf32>
    %c0_50 = arith.constant 0 : index
    %c0_51 = arith.constant 0 : index
    %106 = vector.load %arg15[%c0_50, %c0_51] : memref<1x128xf32, #tpu.memory_space<vmem>>, vector<1x128xf32>
    %c0_52 = arith.constant 0 : index
    %c0_53 = arith.constant 0 : index
    %107 = vector.load %arg16[%c0_52, %c0_53] : memref<1x128xf32, #tpu.memory_space<vmem>>, vector<1x128xf32>
    %cst_54 = arith.constant dense<0.000000e+00> : vector<32xf32>
    %108 = vector.multi_reduction <add>, %105, %cst_54 [1] : vector<32x128xf32> to vector<32xf32>
    %109 = vector.shape_cast %108 : vector<32xf32> to vector<32x1xf32>
    %cst_55 = arith.constant 1.280000e+02 : f32
    %110 = vector.broadcast %cst_55 : f32 to vector<32x1xf32>
    %111 = arith.divf %109, %110 : vector<32x1xf32>
    %112 = vector.broadcast %111 : vector<32x1xf32> to vector<32x128xf32>
    %113 = arith.subf %105, %112 : vector<32x128xf32>
    %114 = arith.mulf %113, %113 : vector<32x128xf32>
    %cst_56 = arith.constant dense<0.000000e+00> : vector<32xf32>
    %115 = vector.multi_reduction <add>, %114, %cst_56 [1] : vector<32x128xf32> to vector<32xf32>
    %116 = vector.shape_cast %115 : vector<32xf32> to vector<32x1xf32>
    %cst_57 = arith.constant 1.280000e+02 : f32
    %117 = vector.broadcast %cst_57 : f32 to vector<32x1xf32>
    %118 = arith.divf %116, %117 : vector<32x1xf32>
    %119 = vector.broadcast %111 : vector<32x1xf32> to vector<32x128xf32>
    %120 = arith.subf %105, %119 : vector<32x128xf32>
    %cst_58 = arith.constant 9.99999974E-6 : f32
    %121 = vector.broadcast %cst_58 : f32 to vector<32x1xf32>
    %122 = arith.addf %118, %121 : vector<32x1xf32>
    %123 = math.rsqrt %122 : vector<32x1xf32>
    %124 = vector.broadcast %123 : vector<32x1xf32> to vector<32x128xf32>
    %125 = arith.mulf %120, %124 : vector<32x128xf32>
    %126 = vector.broadcast %106 : vector<1x128xf32> to vector<32x128xf32>
    %127 = arith.mulf %125, %126 : vector<32x128xf32>
    %128 = vector.broadcast %107 : vector<1x128xf32> to vector<32x128xf32>
    %129 = arith.addf %127, %128 : vector<32x128xf32>
    %130 = arith.truncf %129 : vector<32x128xf32> to vector<32x128xbf16>
    %c0_59 = arith.constant 0 : index
    %c0_60 = arith.constant 0 : index
    %131 = vector.load %arg17[%c0_59, %c0_60] : memref<128x256xbf16, #tpu.memory_space<vmem>>, vector<128x256xbf16>
    %cst_61 = arith.constant dense<0.000000e+00> : vector<32x256xf32>
    %132 = tpu.matmul %130, %131, %cst_61 {dimension_numbers = #tpu.dot_dimension_numbers<[1], [0], [0], [1], [0, 0, 1, 1], [], []>} : vector<32x128xbf16>, vector<128x256xbf16>, vector<32x256xf32> -> vector<32x256xf32>
    %c0_62 = arith.constant 0 : index
    %c0_63 = arith.constant 0 : index
    %133 = vector.load %arg18[%c0_62, %c0_63] : memref<1x256xf32, #tpu.memory_space<vmem>>, vector<1x256xf32>
    %134 = vector.broadcast %133 : vector<1x256xf32> to vector<32x256xf32>
    %135 = arith.addf %132, %134 : vector<32x256xf32>
    %cst_64 = arith.constant 0.000000e+00 : f32
    %136 = vector.broadcast %cst_64 : f32 to vector<32x256xf32>
    %137 = arith.maximumf %135, %136 : vector<32x256xf32>
    %138 = arith.truncf %137 : vector<32x256xf32> to vector<32x256xbf16>
    %c0_65 = arith.constant 0 : index
    %c0_66 = arith.constant 0 : index
    %139 = vector.load %arg19[%c0_65, %c0_66] : memref<256x128xbf16, #tpu.memory_space<vmem>>, vector<256x128xbf16>
    %cst_67 = arith.constant dense<0.000000e+00> : vector<32x128xf32>
    %140 = tpu.matmul %138, %139, %cst_67 {dimension_numbers = #tpu.dot_dimension_numbers<[1], [0], [0], [1], [0, 0, 1, 1], [], []>} : vector<32x256xbf16>, vector<256x128xbf16>, vector<32x128xf32> -> vector<32x128xf32>
    %c0_68 = arith.constant 0 : index
    %c0_69 = arith.constant 0 : index
    %141 = vector.load %arg20[%c0_68, %c0_69] : memref<1x128xf32, #tpu.memory_space<vmem>>, vector<1x128xf32>
    %142 = vector.broadcast %141 : vector<1x128xf32> to vector<32x128xf32>
    %143 = arith.addf %140, %142 : vector<32x128xf32>
    %144 = arith.addf %129, %143 : vector<32x128xf32>
    %c0_70 = arith.constant 0 : index
    %c0_71 = arith.constant 0 : index
    %145 = vector.load %arg21[%c0_70, %c0_71] : memref<1x128xf32, #tpu.memory_space<vmem>>, vector<1x128xf32>
    %c0_72 = arith.constant 0 : index
    %c0_73 = arith.constant 0 : index
    %146 = vector.load %arg22[%c0_72, %c0_73] : memref<1x128xf32, #tpu.memory_space<vmem>>, vector<1x128xf32>
    %cst_74 = arith.constant dense<0.000000e+00> : vector<32xf32>
    %147 = vector.multi_reduction <add>, %144, %cst_74 [1] : vector<32x128xf32> to vector<32xf32>
    %148 = vector.shape_cast %147 : vector<32xf32> to vector<32x1xf32>
    %cst_75 = arith.constant 1.280000e+02 : f32
    %149 = vector.broadcast %cst_75 : f32 to vector<32x1xf32>
    %150 = arith.divf %148, %149 : vector<32x1xf32>
    %151 = vector.broadcast %150 : vector<32x1xf32> to vector<32x128xf32>
    %152 = arith.subf %144, %151 : vector<32x128xf32>
    %153 = arith.mulf %152, %152 : vector<32x128xf32>
    %cst_76 = arith.constant dense<0.000000e+00> : vector<32xf32>
    %154 = vector.multi_reduction <add>, %153, %cst_76 [1] : vector<32x128xf32> to vector<32xf32>
    %155 = vector.shape_cast %154 : vector<32xf32> to vector<32x1xf32>
    %cst_77 = arith.constant 1.280000e+02 : f32
    %156 = vector.broadcast %cst_77 : f32 to vector<32x1xf32>
    %157 = arith.divf %155, %156 : vector<32x1xf32>
    %158 = vector.broadcast %150 : vector<32x1xf32> to vector<32x128xf32>
    %159 = arith.subf %144, %158 : vector<32x128xf32>
    %cst_78 = arith.constant 9.99999974E-6 : f32
    %160 = vector.broadcast %cst_78 : f32 to vector<32x1xf32>
    %161 = arith.addf %157, %160 : vector<32x1xf32>
    %162 = math.rsqrt %161 : vector<32x1xf32>
    %163 = vector.broadcast %162 : vector<32x1xf32> to vector<32x128xf32>
    %164 = arith.mulf %159, %163 : vector<32x128xf32>
    %165 = vector.broadcast %145 : vector<1x128xf32> to vector<32x128xf32>
    %166 = arith.mulf %164, %165 : vector<32x128xf32>
    %167 = vector.broadcast %146 : vector<1x128xf32> to vector<32x128xf32>
    %168 = arith.addf %166, %167 : vector<32x128xf32>
    %c0_79 = arith.constant 0 : index
    %c0_80 = arith.constant 0 : index
    %169 = vector.load %arg23[%c0_79, %c0_80] : memref<32x128xf32, #tpu.memory_space<vmem>>, vector<32x128xf32>
    tpu.vector_store %arg23[%c0_79, %c0_80], %168 {strides = array<i32>} : memref<32x128xf32, #tpu.memory_space<vmem>>, vector<32x128xf32>,
    return
  }
}

</mosaic_0001>

<llo_original>
// kernel: mvp_decoder_layer_forward.1
$region0: #{mvp_decoder_layer_forward.1}
  #allocation0 [shape = 'u32[]', space=smem, size = 0x4, offset = 0x4, fixed_abs, tag = 'smem constant byte address 0x4 - core index']
  #allocation1 [shape = 'u32[144,128]{1,0:T(1,128)}', space=vmem, size = 0x12000, scoped, tag = 'internal scratch']
  %s0 = inlined_call_operand.vmem [shape: f32[32,128], index: 0, kind: input, shape index: {}]
  %s1 = inlined_call_operand.vmem [shape: f32[32,128], index: 1, kind: input, shape index: {}]
  %s2 = inlined_call_operand.vmem [shape: f32[2,32,128], index: 2, kind: input, shape index: {}]
  %s3 = inlined_call_operand.vmem [shape: f32[32,2], index: 3, kind: input, shape index: {}]
  %s4 = inlined_call_operand.vmem [shape: f32[128,128], index: 4, kind: input, shape index: {}]
  %s5 = inlined_call_operand.vmem [shape: bf16[128,128], index: 5, kind: input, shape index: {}]
  %s6 = inlined_call_operand.vmem [shape: f32[1,128], index: 6, kind: input, shape index: {}]
  %s7 = inlined_call_operand.vmem [shape: bf16[128,128], index: 7, kind: input, shape index: {}]
  %s8 = inlined_call_operand.vmem [shape: f32[1,128], index: 8, kind: input, shape index: {}]
  %s9 = inlined_call_operand.vmem [shape: bf16[128,128], index: 9, kind: input, shape index: {}]
  %s10 = inlined_call_operand.vmem [shape: f32[1,128], index: 10, kind: input, shape index: {}]
  %s11 = inlined_call_operand.vmem [shape: bf16[128,128], index: 11, kind: input, shape index: {}]
  %s12 = inlined_call_operand.vmem [shape: f32[1,128], index: 12, kind: input, shape index: {}]
  %s13 = inlined_call_operand.vmem [shape: f32[1,128], index: 13, kind: input, shape index: {}]
  %s14 = inlined_call_operand.vmem [shape: f32[1,128], index: 14, kind: input, shape index: {}]
  %s15 = inlined_call_operand.vmem [shape: f32[1,128], index: 15, kind: input, shape index: {}]
  %s16 = inlined_call_operand.vmem [shape: f32[1,128], index: 16, kind: input, shape index: {}]
  %s17 = inlined_call_operand.vmem [shape: bf16[128,256], index: 17, kind: input, shape index: {}]
  %s18 = inlined_call_operand.vmem [shape: f32[1,256], index: 18, kind: input, shape index: {}]
  %s19 = inlined_call_operand.vmem [shape: bf16[256,128], index: 19, kind: input, shape index: {}]
  %s20 = inlined_call_operand.vmem [shape: f32[1,128], index: 20, kind: input, shape index: {}]
  %s21 = inlined_call_operand.vmem [shape: f32[1,128], index: 21, kind: input, shape index: {}]
  %s22 = inlined_call_operand.vmem [shape: f32[1,128], index: 22, kind: input, shape index: {}]
  %s23 = inlined_call_operand.hbm [shape: f32[32,128], index: 23, kind: output, shape index: {}]
  %s24 = sld [smem:[#allocation0]]
  $region102: #{mvp_decoder_layer_forward.1} parent=0
    _
  %s26 = ssub.s32 1, %s24
  %s27 = scalar_select 0, %s26, %s24
  $region1: #{mvp_decoder_layer_forward.1} parent=0
    #allocation2 [shape = 'u8[16384]{0}', space=vmem, size = 0x4000, scoped, tag = 'output window, operand 0, single buffered']
    #allocation3 [shape = 's32[1]{0}', space=sflag, size = 0x4, scoped, tag = 'scoped memory for mvp_decoder_layer_forward.1']
    %28 = vsyncpa [#allocation3], 0
    // Predicated region
    $region2: #{mvp_decoder_layer_forward.1} parent=1 // pred_check
      _
    $region3: #{mvp_decoder_layer_forward.1} parent=1 // pred_check_branch
      %30 = sbr.rel (0) target = $region5
    $region4: #{mvp_decoder_layer_forward.1} parent=1 // pred_region
      _
    $region5: #{mvp_decoder_layer_forward.1} parent=1 // pred_fallthru
      _
    // Predicated region
    $region6: #{mvp_decoder_layer_forward.1} parent=1 // pred_check
      _
    $region7: #{mvp_decoder_layer_forward.1} parent=1 // pred_check_branch
      %32 = sbr.rel (0) target = $region9
    $region8: #{mvp_decoder_layer_forward.1} parent=1 // pred_region
      _
    $region9: #{mvp_decoder_layer_forward.1} parent=1 // pred_fallthru
      _
    // Predicated region
    $region10: #{mvp_decoder_layer_forward.1} parent=1 // pred_check
      _
    $region11: #{mvp_decoder_layer_forward.1} parent=1 // pred_check_branch
      %34 = sbr.rel (0) target = $region13
    $region12: #{mvp_decoder_layer_forward.1} parent=1 // pred_region
      _
    $region13: #{mvp_decoder_layer_forward.1} parent=1 // pred_fallthru
      _
    // Predicated region
    $region14: #{mvp_decoder_layer_forward.1} parent=1 // pred_check
      _
    $region15: #{mvp_decoder_layer_forward.1} parent=1 // pred_check_branch
      %36 = sbr.rel (0) target = $region17
    $region16: #{mvp_decoder_layer_forward.1} parent=1 // pred_region
      _
    $region17: #{mvp_decoder_layer_forward.1} parent=1 // pred_fallthru
      _
    // Predicated region
    $region18: #{mvp_decoder_layer_forward.1} parent=1 // pred_check
      _
    $region19: #{mvp_decoder_layer_forward.1} parent=1 // pred_check_branch
      %38 = sbr.rel (0) target = $region21
    $region20: #{mvp_decoder_layer_forward.1} parent=1 // pred_region
      _
    $region21: #{mvp_decoder_layer_forward.1} parent=1 // pred_fallthru
      _
    // Predicated region
    $region22: #{mvp_decoder_layer_forward.1} parent=1 // pred_check
      _
    $region23: #{mvp_decoder_layer_forward.1} parent=1 // pred_check_branch
      %40 = sbr.rel (0) target = $region25
    $region24: #{mvp_decoder_layer_forward.1} parent=1 // pred_region
      _
    $region25: #{mvp_decoder_layer_forward.1} parent=1 // pred_fallthru
      _
    // Predicated region
    $region26: #{mvp_decoder_layer_forward.1} parent=1 // pred_check
      _
    $region27: #{mvp_decoder_layer_forward.1} parent=1 // pred_check_branch
      %42 = sbr.rel (0) target = $region29
    $region28: #{mvp_decoder_layer_forward.1} parent=1 // pred_region
      _
    $region29: #{mvp_decoder_layer_forward.1} parent=1 // pred_fallthru
      _
    // Predicated region
    $region30: #{mvp_decoder_layer_forward.1} parent=1 // pred_check
      _
    $region31: #{mvp_decoder_layer_forward.1} parent=1 // pred_check_branch
      %44 = sbr.rel (0) target = $region33
    $region32: #{mvp_decoder_layer_forward.1} parent=1 // pred_region
      _
    $region33: #{mvp_decoder_layer_forward.1} parent=1 // pred_fallthru
      _
    // Predicated region
    $region34: #{mvp_decoder_layer_forward.1} parent=1 // pred_check
      _
    $region35: #{mvp_decoder_layer_forward.1} parent=1 // pred_check_branch
      %46 = sbr.rel (0) target = $region37
    $region36: #{mvp_decoder_layer_forward.1} parent=1 // pred_region
      _
    $region37: #{mvp_decoder_layer_forward.1} parent=1 // pred_fallthru
      _
    // Predicated region
    $region38: #{mvp_decoder_layer_forward.1} parent=1 // pred_check
      _
    $region39: #{mvp_decoder_layer_forward.1} parent=1 // pred_check_branch
      %48 = sbr.rel (0) target = $region41
    $region40: #{mvp_decoder_layer_forward.1} parent=1 // pred_region
      _
    $region41: #{mvp_decoder_layer_forward.1} parent=1 // pred_fallthru
      _
    // Predicated region
    $region42: #{mvp_decoder_layer_forward.1} parent=1 // pred_check
      _
    $region43: #{mvp_decoder_layer_forward.1} parent=1 // pred_check_branch
      %50 = sbr.rel (0) target = $region45
    $region44: #{mvp_decoder_layer_forward.1} parent=1 // pred_region
      _
    $region45: #{mvp_decoder_layer_forward.1} parent=1 // pred_fallthru
      _
    // Predicated region
    $region46: #{mvp_decoder_layer_forward.1} parent=1 // pred_check
      _
    $region47: #{mvp_decoder_layer_forward.1} parent=1 // pred_check_branch
      %52 = sbr.rel (0) target = $region49
    $region48: #{mvp_decoder_layer_forward.1} parent=1 // pred_region
      _
    $region49: #{mvp_decoder_layer_forward.1} parent=1 // pred_fallthru
      _
    // Predicated region
    $region50: #{mvp_decoder_layer_forward.1} parent=1 // pred_check
      _
    $region51: #{mvp_decoder_layer_forward.1} parent=1 // pred_check_branch
      %54 = sbr.rel (0) target = $region53
    $region52: #{mvp_decoder_layer_forward.1} parent=1 // pred_region
      _
    $region53: #{mvp_decoder_layer_forward.1} parent=1 // pred_fallthru
      _
    // Predicated region
    $region54: #{mvp_decoder_layer_forward.1} parent=1 // pred_check
      _
    $region55: #{mvp_decoder_layer_forward.1} parent=1 // pred_check_branch
      %56 = sbr.rel (0) target = $region57
    $region56: #{mvp_decoder_layer_forward.1} parent=1 // pred_region
      _
    $region57: #{mvp_decoder_layer_forward.1} parent=1 // pred_fallthru
      _
    // Predicated region
    $region58: #{mvp_decoder_layer_forward.1} parent=1 // pred_check
      _
    $region59: #{mvp_decoder_layer_forward.1} parent=1 // pred_check_branch
      %58 = sbr.rel (0) target = $region61
    $region60: #{mvp_decoder_layer_forward.1} parent=1 // pred_region
      _
    $region61: #{mvp_decoder_layer_forward.1} parent=1 // pred_fallthru
      _
    // Predicated region
    $region62: #{mvp_decoder_layer_forward.1} parent=1 // pred_check
      _
    $region63: #{mvp_decoder_layer_forward.1} parent=1 // pred_check_branch
      %60 = sbr.rel (0) target = $region65
    $region64: #{mvp_decoder_layer_forward.1} parent=1 // pred_region
      _
    $region65: #{mvp_decoder_layer_forward.1} parent=1 // pred_fallthru
      _
    // Predicated region
    $region66: #{mvp_decoder_layer_forward.1} parent=1 // pred_check
      _
    $region67: #{mvp_decoder_layer_forward.1} parent=1 // pred_check_branch
      %62 = sbr.rel (0) target = $region69
    $region68: #{mvp_decoder_layer_forward.1} parent=1 // pred_region
      _
    $region69: #{mvp_decoder_layer_forward.1} parent=1 // pred_fallthru
      _
    // Predicated region
    $region70: #{mvp_decoder_layer_forward.1} parent=1 // pred_check
      _
    $region71: #{mvp_decoder_layer_forward.1} parent=1 // pred_check_branch
      %64 = sbr.rel (0) target = $region73
    $region72: #{mvp_decoder_layer_forward.1} parent=1 // pred_region
      _
    $region73: #{mvp_decoder_layer_forward.1} parent=1 // pred_fallthru
      _
    // Predicated region
    $region74: #{mvp_decoder_layer_forward.1} parent=1 // pred_check
      _
    $region75: #{mvp_decoder_layer_forward.1} parent=1 // pred_check_branch
      %66 = sbr.rel (0) target = $region77
    $region76: #{mvp_decoder_layer_forward.1} parent=1 // pred_region
      _
    $region77: #{mvp_decoder_layer_forward.1} parent=1 // pred_fallthru
      _
    // Predicated region
    $region78: #{mvp_decoder_layer_forward.1} parent=1 // pred_check
      _
    $region79: #{mvp_decoder_layer_forward.1} parent=1 // pred_check_branch
      %68 = sbr.rel (0) target = $region81
    $region80: #{mvp_decoder_layer_forward.1} parent=1 // pred_region
      _
    $region81: #{mvp_decoder_layer_forward.1} parent=1 // pred_fallthru
      _
    // Predicated region
    $region82: #{mvp_decoder_layer_forward.1} parent=1 // pred_check
      _
    $region83: #{mvp_decoder_layer_forward.1} parent=1 // pred_check_branch
      %70 = sbr.rel (0) target = $region85
    $region84: #{mvp_decoder_layer_forward.1} parent=1 // pred_region
      _
    $region85: #{mvp_decoder_layer_forward.1} parent=1 // pred_fallthru
      _
    // Predicated region
    $region86: #{mvp_decoder_layer_forward.1} parent=1 // pred_check
      _
    $region87: #{mvp_decoder_layer_forward.1} parent=1 // pred_check_branch
      %72 = sbr.rel (0) target = $region89
    $region88: #{mvp_decoder_layer_forward.1} parent=1 // pred_region
      _
    $region89: #{mvp_decoder_layer_forward.1} parent=1 // pred_fallthru
      _
    // Predicated region
    $region90: #{mvp_decoder_layer_forward.1} parent=1 // pred_check
      _
    $region91: #{mvp_decoder_layer_forward.1} parent=1 // pred_check_branch
      %74 = sbr.rel (0) target = $region93
    $region92: #{mvp_decoder_layer_forward.1} parent=1 // pred_region
      _
    $region93: #{mvp_decoder_layer_forward.1} parent=1 // pred_fallthru
      _
    %v76 = vld [vmem:[%s4] sm:$0xff]
    %v77 = vld [vmem:[%s4 + $0x8] sm:$0xff]
    %v78 = vld [vmem:[%s4 + $0x10] sm:$0xff]
    %v79 = vld [vmem:[%s4 + $0x18] sm:$0xff]
    %v80 = vld [vmem:[%s4 + $0x20] sm:$0xff]
    %v81 = vld [vmem:[%s4 + $0x28] sm:$0xff]
    %v82 = vld [vmem:[%s4 + $0x30] sm:$0xff]
    %v83 = vld [vmem:[%s4 + $0x38] sm:$0xff]
    %v84 = vld [vmem:[%s4 + $0x40] sm:$0xff]
    %v85 = vld [vmem:[%s4 + $0x48] sm:$0xff]
    %v86 = vld [vmem:[%s4 + $0x50] sm:$0xff]
    %v87 = vld [vmem:[%s4 + $0x58] sm:$0xff]
    %v88 = vld [vmem:[%s4 + $0x60] sm:$0xff]
    %v89 = vld [vmem:[%s4 + $0x68] sm:$0xff]
    %v90 = vld [vmem:[%s4 + $0x70] sm:$0xff]
    %v91 = vld [vmem:[%s4 + $0x78] sm:$0xff]
    %v92 = vpack.c.bf16 %v77, %v76
    %v93 = vpack.c.bf16 %v79, %v78
    %v94 = vpack.c.bf16 %v81, %v80
    %v95 = vpack.c.bf16 %v83, %v82
    %v96 = vpack.c.bf16 %v85, %v84
    %v97 = vpack.c.bf16 %v87, %v86
    %v98 = vpack.c.bf16 %v89, %v88
    %v99 = vpack.c.bf16 %v91, %v90
    %v100 = vld [vmem:[%s0] sm:$0xff]
    %v101 = vld [vmem:[%s0 + $0x8] sm:$0xff]
    %v102 = vld [vmem:[%s0 + $0x10] sm:$0xff]
    %v103 = vld [vmem:[%s0 + $0x18] sm:$0xff]
    %v104 = vld [vmem:[%s1] sm:$0xff]
    %v105 = vld [vmem:[%s1 + $0x8] sm:$0xff]
    %v106 = vld [vmem:[%s1 + $0x10] sm:$0xff]
    %v107 = vld [vmem:[%s1 + $0x18] sm:$0xff]
    %v108 = vadd.f32 %v100, %v104
    %v109 = vadd.f32 %v101, %v105
    %v110 = vadd.f32 %v102, %v106
    %v111 = vadd.f32 %v103, %v107
    %v112 = vpack.c.bf16 %v109, %v108
    %v113 = vpack.c.bf16 %v111, %v110
    %v114 = vpack.c.bf16 %v101, %v100
    %v115 = vpack.c.bf16 %v103, %v102
    %v116 = vld [vmem:[%s5] sm:$0xf]
    %v117 = vld [vmem:[%s5 + $0x4] sm:$0xf]
    %v118 = vld [vmem:[%s5 + $0x8] sm:$0xf]
    %v119 = vld [vmem:[%s5 + $0xc] sm:$0xf]
    %v120 = vld [vmem:[%s5 + $0x10] sm:$0xf]
    %v121 = vld [vmem:[%s5 + $0x14] sm:$0xf]
    %v122 = vld [vmem:[%s5 + $0x18] sm:$0xf]
    %v123 = vld [vmem:[%s5 + $0x1c] sm:$0xf]
    %v124 = vld [vmem:[%s5 + $0x20] sm:$0xf]
    %v125 = vld [vmem:[%s5 + $0x24] sm:$0xf]
    %v126 = vld [vmem:[%s5 + $0x28] sm:$0xf]
    %v127 = vld [vmem:[%s5 + $0x2c] sm:$0xf]
    %v128 = vld [vmem:[%s5 + $0x30] sm:$0xf]
    %v129 = vld [vmem:[%s5 + $0x34] sm:$0xf]
    %v130 = vld [vmem:[%s5 + $0x38] sm:$0xf]
    %v131 = vld [vmem:[%s5 + $0x3c] sm:$0xf]
    %v132 = vld [vmem:[%s6] sm:$0x1]
    %v134 = vlaneseq
    %v135 = vshrl.u32 %v134, 7
    %v136 = vsub.s32 0, %v135
    %v137 = vrot.slane %v132, %v136
    %v155 = vunpack.c.l.b16 %v116
    %v156 = vunpack.c.l.b16 %v117
    %v157 = vunpack.c.l.b16 %v118
    %v158 = vunpack.c.l.b16 %v119
    %v159 = vunpack.c.l.b16 %v120
    %v160 = vunpack.c.l.b16 %v121
    %v161 = vunpack.c.l.b16 %v122
    %v162 = vunpack.c.l.b16 %v123
    %v163 = vunpack.c.l.b16 %v124
    %v164 = vunpack.c.l.b16 %v125
    %v165 = vunpack.c.l.b16 %v126
    %v166 = vunpack.c.l.b16 %v127
    %v167 = vunpack.c.l.b16 %v128
    %v168 = vunpack.c.l.b16 %v129
    %v169 = vunpack.c.l.b16 %v130
    %v170 = vunpack.c.l.b16 %v131
    %v171 = vpack.c.b16 %v156, %v155
    %v172 = vpack.c.b16 %v158, %v157
    %v173 = vpack.c.b16 %v160, %v159
    %v174 = vpack.c.b16 %v162, %v161
    %v175 = vpack.c.b16 %v164, %v163
    %v176 = vpack.c.b16 %v166, %v165
    %v177 = vpack.c.b16 %v168, %v167
    %v178 = vpack.c.b16 %v170, %v169
    %187 = vmatprep.subr.bf16.mxu0 0
    %188 = vmatpush1.bf16.msra.mxu0 %v171
    %189 = vmatprep.subr.bf16.mxu0 0
    %190 = vmatpush1.bf16.msra.mxu0 %v172
    %191 = vmatprep.subr.bf16.mxu0 0
    %192 = vmatpush1.bf16.msra.mxu0 %v173
    %193 = vmatprep.subr.bf16.mxu0 0
    %194 = vmatpush1.bf16.msra.mxu0 %v174
    %195 = vmatprep.subr.bf16.mxu0 0
    %196 = vmatpush1.bf16.msra.mxu0 %v175
    %197 = vmatprep.subr.bf16.mxu0 0
    %198 = vmatpush1.bf16.msra.mxu0 %v176
    %199 = vmatprep.subr.bf16.mxu0 0
    %200 = vmatpush1.bf16.msra.mxu0 %v177
    %201 = vmatprep.subr.bf16.mxu0 0
    %202 = vmatpush1.bf16.msra.mxu0 %v178
    %203 = vmatprep.subr.bf16.mxu0 0
    %204 = vmatpush1.bf16.msra.mxu0 0
    %205 = vmatprep.subr.bf16.mxu0 0
    %206 = vmatpush1.bf16.msra.mxu0 0
    %207 = vmatprep.subr.bf16.mxu0 0
    %208 = vmatpush1.bf16.msra.mxu0 0
    %209 = vmatprep.subr.bf16.mxu0 0
    %210 = vmatpush1.bf16.msra.mxu0 0
    %211 = vmatprep.subr.bf16.mxu0 0
    %212 = vmatpush1.bf16.msra.mxu0 0
    %213 = vmatprep.subr.bf16.mxu0 0
    %214 = vmatpush1.bf16.msra.mxu0 0
    %215 = vmatprep.subr.bf16.mxu0 0
    %216 = vmatpush1.bf16.msra.mxu0 0
    %217 = vmatprep.subr.bf16.mxu0 0
    %218 = vmatpush1.bf16.msra.mxu0 0
    %219 = vmatprep.mubr.bf16.mxu0 0
    %220 = vmatmul.mubr.bf16.gmra.mrb[0].mxu0 %v112
    %v221 = vpop.f32.mrb[0].mxu0
    %v222 = vadd.f32 %v137, %v221
    %v223 = vpop.f32.mrb[0].mxu0
    %v224 = vpop.f32.mrb[0].mxu0
    %v225 = vadd.f32 %v137, %v224
    %v226 = vpop.f32.mrb[0].mxu0
    %227 = vmatprep.mubr.bf16.mxu0 0
    %228 = vmatmul.mubr.bf16.gmra.mrb[0].mxu0 %v113
    %v229 = vpop.f32.mrb[0].mxu0
    %v230 = vadd.f32 %v137, %v229
    %v231 = vpop.f32.mrb[0].mxu0
    %v232 = vpop.f32.mrb[0].mxu0
    %v233 = vadd.f32 %v137, %v232
    %v234 = vpop.f32.mrb[0].mxu0
    %235 = vdwg.mxu0
    %v236 = vld [vmem:[%s7] sm:$0xf]
    %v237 = vld [vmem:[%s7 + $0x4] sm:$0xf]
    %v238 = vld [vmem:[%s7 + $0x8] sm:$0xf]
    %v239 = vld [vmem:[%s7 + $0xc] sm:$0xf]
    %v240 = vld [vmem:[%s7 + $0x10] sm:$0xf]
    %v241 = vld [vmem:[%s7 + $0x14] sm:$0xf]
    %v242 = vld [vmem:[%s7 + $0x18] sm:$0xf]
    %v243 = vld [vmem:[%s7 + $0x1c] sm:$0xf]
    %v244 = vld [vmem:[%s7 + $0x20] sm:$0xf]
    %v245 = vld [vmem:[%s7 + $0x24] sm:$0xf]
    %v246 = vld [vmem:[%s7 + $0x28] sm:$0xf]
    %v247 = vld [vmem:[%s7 + $0x2c] sm:$0xf]
    %v248 = vld [vmem:[%s7 + $0x30] sm:$0xf]
    %v249 = vld [vmem:[%s7 + $0x34] sm:$0xf]
    %v250 = vld [vmem:[%s7 + $0x38] sm:$0xf]
    %v251 = vld [vmem:[%s7 + $0x3c] sm:$0xf]
    %v252 = vld [vmem:[%s8] sm:$0x1]
    %v254 = vlaneseq
    %v255 = vshrl.u32 %v254, 7
    %v256 = vsub.s32 0, %v255
    %v257 = vrot.slane %v252, %v256
    %v275 = vunpack.c.l.b16 %v236
    %v276 = vunpack.c.l.b16 %v237
    %v277 = vunpack.c.l.b16 %v238
    %v278 = vunpack.c.l.b16 %v239
    %v279 = vunpack.c.l.b16 %v240
    %v280 = vunpack.c.l.b16 %v241
    %v281 = vunpack.c.l.b16 %v242
    %v282 = vunpack.c.l.b16 %v243
    %v283 = vunpack.c.l.b16 %v244
    %v284 = vunpack.c.l.b16 %v245
    %v285 = vunpack.c.l.b16 %v246
    %v286 = vunpack.c.l.b16 %v247
    %v287 = vunpack.c.l.b16 %v248
    %v288 = vunpack.c.l.b16 %v249
    %v289 = vunpack.c.l.b16 %v250
    %v290 = vunpack.c.l.b16 %v251
    %v291 = vpack.c.b16 %v276, %v275
    %v292 = vpack.c.b16 %v278, %v277
    %v293 = vpack.c.b16 %v280, %v279
    %v294 = vpack.c.b16 %v282, %v281
    %v295 = vpack.c.b16 %v284, %v283
    %v296 = vpack.c.b16 %v286, %v285
    %v297 = vpack.c.b16 %v288, %v287
    %v298 = vpack.c.b16 %v290, %v289
    %307 = vmatprep.subr.bf16.mxu0 0
    %308 = vmatpush1.bf16.msra.mxu0 %v291
    %309 = vmatprep.subr.bf16.mxu0 0
    %310 = vmatpush1.bf16.msra.mxu0 %v292
    %311 = vmatprep.subr.bf16.mxu0 0
    %312 = vmatpush1.bf16.msra.mxu0 %v293
    %313 = vmatprep.subr.bf16.mxu0 0
    %314 = vmatpush1.bf16.msra.mxu0 %v294
    %315 = vmatprep.subr.bf16.mxu0 0
    %316 = vmatpush1.bf16.msra.mxu0 %v295
    %317 = vmatprep.subr.bf16.mxu0 0
    %318 = vmatpush1.bf16.msra.mxu0 %v296
    %319 = vmatprep.subr.bf16.mxu0 0
    %320 = vmatpush1.bf16.msra.mxu0 %v297
    %321 = vmatprep.subr.bf16.mxu0 0
    %322 = vmatpush1.bf16.msra.mxu0 %v298
    %323 = vmatprep.subr.bf16.mxu0 0
    %324 = vmatpush1.bf16.msra.mxu0 0
    %325 = vmatprep.subr.bf16.mxu0 0
    %326 = vmatpush1.bf16.msra.mxu0 0
    %327 = vmatprep.subr.bf16.mxu0 0
    %328 = vmatpush1.bf16.msra.mxu0 0
    %329 = vmatprep.subr.bf16.mxu0 0
    %330 = vmatpush1.bf16.msra.mxu0 0
    %331 = vmatprep.subr.bf16.mxu0 0
    %332 = vmatpush1.bf16.msra.mxu0 0
    %333 = vmatprep.subr.bf16.mxu0 0
    %334 = vmatpush1.bf16.msra.mxu0 0
    %335 = vmatprep.subr.bf16.mxu0 0
    %336 = vmatpush1.bf16.msra.mxu0 0
    %337 = vmatprep.subr.bf16.mxu0 0
    %338 = vmatpush1.bf16.msra.mxu0 0
    %339 = vmatprep.mubr.bf16.mxu0 0
    %340 = vmatmul.mubr.bf16.gmra.mrb[0].mxu0 %v112
    %v341 = vpop.f32.mrb[0].mxu0
    %v342 = vadd.f32 %v257, %v341
    %v343 = vpop.f32.mrb[0].mxu0
    %v344 = vpop.f32.mrb[0].mxu0
    %v345 = vadd.f32 %v257, %v344
    %v346 = vpop.f32.mrb[0].mxu0
    %347 = vmatprep.mubr.bf16.mxu0 0
    %348 = vmatmul.mubr.bf16.gmra.mrb[0].mxu0 %v113
    %v349 = vpop.f32.mrb[0].mxu0
    %v350 = vadd.f32 %v257, %v349
    %v351 = vpop.f32.mrb[0].mxu0
    %v352 = vpop.f32.mrb[0].mxu0
    %v353 = vadd.f32 %v257, %v352
    %v354 = vpop.f32.mrb[0].mxu0
    %355 = vdwg.mxu0
    %v356 = vld [vmem:[%s9] sm:$0xf]
    %v357 = vld [vmem:[%s9 + $0x4] sm:$0xf]
    %v358 = vld [vmem:[%s9 + $0x8] sm:$0xf]
    %v359 = vld [vmem:[%s9 + $0xc] sm:$0xf]
    %v360 = vld [vmem:[%s9 + $0x10] sm:$0xf]
    %v361 = vld [vmem:[%s9 + $0x14] sm:$0xf]
    %v362 = vld [vmem:[%s9 + $0x18] sm:$0xf]
    %v363 = vld [vmem:[%s9 + $0x1c] sm:$0xf]
    %v364 = vld [vmem:[%s9 + $0x20] sm:$0xf]
    %v365 = vld [vmem:[%s9 + $0x24] sm:$0xf]
    %v366 = vld [vmem:[%s9 + $0x28] sm:$0xf]
    %v367 = vld [vmem:[%s9 + $0x2c] sm:$0xf]
    %v368 = vld [vmem:[%s9 + $0x30] sm:$0xf]
    %v369 = vld [vmem:[%s9 + $0x34] sm:$0xf]
    %v370 = vld [vmem:[%s9 + $0x38] sm:$0xf]
    %v371 = vld [vmem:[%s9 + $0x3c] sm:$0xf]
    %v372 = vld [vmem:[%s10] sm:$0x1]
    %v374 = vlaneseq
    %v375 = vshrl.u32 %v374, 7
    %v376 = vsub.s32 0, %v375
    %v377 = vrot.slane %v372, %v376
    %v395 = vunpack.c.l.b16 %v356
    %v396 = vunpack.c.l.b16 %v357
    %v397 = vunpack.c.l.b16 %v358
    %v398 = vunpack.c.l.b16 %v359
    %v399 = vunpack.c.l.b16 %v360
    %v400 = vunpack.c.l.b16 %v361
    %v401 = vunpack.c.l.b16 %v362
    %v402 = vunpack.c.l.b16 %v363
    %v403 = vunpack.c.l.b16 %v364
    %v404 = vunpack.c.l.b16 %v365
    %v405 = vunpack.c.l.b16 %v366
    %v406 = vunpack.c.l.b16 %v367
    %v407 = vunpack.c.l.b16 %v368
    %v408 = vunpack.c.l.b16 %v369
    %v409 = vunpack.c.l.b16 %v370
    %v410 = vunpack.c.l.b16 %v371
    %v411 = vpack.c.b16 %v396, %v395
    %v412 = vpack.c.b16 %v398, %v397
    %v413 = vpack.c.b16 %v400, %v399
    %v414 = vpack.c.b16 %v402, %v401
    %v415 = vpack.c.b16 %v404, %v403
    %v416 = vpack.c.b16 %v406, %v405
    %v417 = vpack.c.b16 %v408, %v407
    %v418 = vpack.c.b16 %v410, %v409
    %427 = vmatprep.subr.bf16.mxu0 0
    %428 = vmatpush1.bf16.msra.mxu0 %v411
    %429 = vmatprep.subr.bf16.mxu0 0
    %430 = vmatpush1.bf16.msra.mxu0 %v412
    %431 = vmatprep.subr.bf16.mxu0 0
    %432 = vmatpush1.bf16.msra.mxu0 %v413
    %433 = vmatprep.subr.bf16.mxu0 0
    %434 = vmatpush1.bf16.msra.mxu0 %v414
    %435 = vmatprep.subr.bf16.mxu0 0
    %436 = vmatpush1.bf16.msra.mxu0 %v415
    %437 = vmatprep.subr.bf16.mxu0 0
    %438 = vmatpush1.bf16.msra.mxu0 %v416
    %439 = vmatprep.subr.bf16.mxu0 0
    %440 = vmatpush1.bf16.msra.mxu0 %v417
    %441 = vmatprep.subr.bf16.mxu0 0
    %442 = vmatpush1.bf16.msra.mxu0 %v418
    %443 = vmatprep.subr.bf16.mxu0 0
    %444 = vmatpush1.bf16.msra.mxu0 0
    %445 = vmatprep.subr.bf16.mxu0 0
    %446 = vmatpush1.bf16.msra.mxu0 0
    %447 = vmatprep.subr.bf16.mxu0 0
    %448 = vmatpush1.bf16.msra.mxu0 0
    %449 = vmatprep.subr.bf16.mxu0 0
    %450 = vmatpush1.bf16.msra.mxu0 0
    %451 = vmatprep.subr.bf16.mxu0 0
    %452 = vmatpush1.bf16.msra.mxu0 0
    %453 = vmatprep.subr.bf16.mxu0 0
    %454 = vmatpush1.bf16.msra.mxu0 0
    %455 = vmatprep.subr.bf16.mxu0 0
    %456 = vmatpush1.bf16.msra.mxu0 0
    %457 = vmatprep.subr.bf16.mxu0 0
    %458 = vmatpush1.bf16.msra.mxu0 0
    %459 = vmatprep.mubr.bf16.mxu0 0
    %460 = vmatmul.mubr.bf16.gmra.mrb[0].mxu0 %v114
    %v461 = vpop.f32.mrb[0].mxu0
    %v462 = vadd.f32 %v377, %v461
    %v463 = vpop.f32.mrb[0].mxu0
    %v464 = vpop.f32.mrb[0].mxu0
    %v465 = vadd.f32 %v377, %v464
    %v466 = vpop.f32.mrb[0].mxu0
    %467 = vmatprep.mubr.bf16.mxu0 0
    %468 = vmatmul.mubr.bf16.gmra.mrb[0].mxu0 %v115
    %v469 = vpop.f32.mrb[0].mxu0
    %v470 = vadd.f32 %v377, %v469
    %v471 = vpop.f32.mrb[0].mxu0
    %v472 = vpop.f32.mrb[0].mxu0
    %v473 = vadd.f32 %v377, %v472
    %v474 = vpop.f32.mrb[0].mxu0
    %475 = vdwg.mxu0
    %v476 = vpack.c.bf16 %v225, %v222
    %v477 = vmul.f32 %v342, %v76
    %v478 = vmul.f32 %v345, %v77
    %v479 = vmul.f32 %v342, %v78
    %v480 = vmul.f32 %v345, %v79
    %v481 = vmul.f32 %v342, %v80
    %v482 = vmul.f32 %v345, %v81
    %v483 = vmul.f32 %v342, %v82
    %v484 = vmul.f32 %v345, %v83
    %v485 = vmul.f32 %v342, %v84
    %v486 = vmul.f32 %v345, %v85
    %v487 = vmul.f32 %v342, %v86
    %v488 = vmul.f32 %v345, %v87
    %v489 = vmul.f32 %v342, %v88
    %v490 = vmul.f32 %v345, %v89
    %v491 = vmul.f32 %v342, %v90
    %v492 = vmul.f32 %v345, %v91
    %v493 = vpack.c.bf16 %v478, %v477
    %v494 = vpack.c.bf16 %v480, %v479
    %v495 = vpack.c.bf16 %v482, %v481
    %v496 = vpack.c.bf16 %v484, %v483
    %v497 = vpack.c.bf16 %v486, %v485
    %v498 = vpack.c.bf16 %v488, %v487
    %v499 = vpack.c.bf16 %v490, %v489
    %v500 = vpack.c.bf16 %v492, %v491
    %v501 = vmul.f32 %v462, %v76
    %v502 = vmul.f32 %v465, %v77
    %v503 = vmul.f32 %v462, %v78
    %v504 = vmul.f32 %v465, %v79
    %v505 = vmul.f32 %v462, %v80
    %v506 = vmul.f32 %v465, %v81
    %v507 = vmul.f32 %v462, %v82
    %v508 = vmul.f32 %v465, %v83
    %v509 = vmul.f32 %v462, %v84
    %v510 = vmul.f32 %v465, %v85
    %v511 = vmul.f32 %v462, %v86
    %v512 = vmul.f32 %v465, %v87
    %v513 = vmul.f32 %v462, %v88
    %v514 = vmul.f32 %v465, %v89
    %v515 = vmul.f32 %v462, %v90
    %v516 = vmul.f32 %v465, %v91
    %v517 = vpack.c.bf16 %v502, %v501
    %v518 = vpack.c.bf16 %v504, %v503
    %v519 = vpack.c.bf16 %v506, %v505
    %v520 = vpack.c.bf16 %v508, %v507
    %v521 = vpack.c.bf16 %v510, %v509
    %v522 = vpack.c.bf16 %v512, %v511
    %v523 = vpack.c.bf16 %v514, %v513
    %v524 = vpack.c.bf16 %v516, %v515
    %525 = vmatprep.subr.bf16.mxu0 0
    %526 = vmatpush1.bf16.xpose.msra.mxu0 %v493
    %527 = vmatprep.subr.bf16.mxu0 0
    %528 = vmatpush1.bf16.xpose.msra.mxu0 %v494
    %529 = vmatprep.subr.bf16.mxu0 0
    %530 = vmatpush1.bf16.xpose.msra.mxu0 %v495
    %531 = vmatprep.subr.bf16.mxu0 0
    %532 = vmatpush1.bf16.xpose.msra.mxu0 %v496
    %533 = vmatprep.subr.bf16.mxu0 0
    %534 = vmatpush1.bf16.xpose.msra.mxu0 %v497
    %535 = vmatprep.subr.bf16.mxu0 0
    %536 = vmatpush1.bf16.xpose.msra.mxu0 %v498
    %537 = vmatprep.subr.bf16.mxu0 0
    %538 = vmatpush1.bf16.xpose.msra.mxu0 %v499
    %539 = vmatprep.subr.bf16.mxu0 0
    %540 = vmatpush1.bf16.xpose.msra.mxu0 %v500
    %541 = vmatprep.subr.bf16.mxu0 0
    %542 = vmatpush1.bf16.xpose.msra.mxu0 0
    %543 = vmatprep.subr.bf16.mxu0 0
    %544 = vmatpush1.bf16.xpose.msra.mxu0 0
    %545 = vmatprep.subr.bf16.mxu0 0
    %546 = vmatpush1.bf16.xpose.msra.mxu0 0
    %547 = vmatprep.subr.bf16.mxu0 0
    %548 = vmatpush1.bf16.xpose.msra.mxu0 0
    %549 = vmatprep.subr.bf16.mxu0 0
    %550 = vmatpush1.bf16.xpose.msra.mxu0 0
    %551 = vmatprep.subr.bf16.mxu0 0
    %552 = vmatpush1.bf16.xpose.msra.mxu0 0
    %553 = vmatprep.subr.bf16.mxu0 0
    %554 = vmatpush1.bf16.xpose.msra.mxu0 0
    %555 = vmatprep.subr.bf16.mxu0 0
    %556 = vmatpush1.bf16.xpose.msra.mxu0 0
    %557 = vmatprep.mubr.bf16.mxu0 0
    %558 = vmatmul.mubr.bf16.gmra.mrb[0].mxu0 %v476
    %v559 = vpop.f32.mrb[0].mxu0
    %v560 = vadd.f32 0.0, %v559
    %v561 = vpop.f32.mrb[0].mxu0
    %v562 = vpop.f32.mrb[0].mxu0
    %v563 = vadd.f32 0.0, %v562
    %v564 = vpop.f32.mrb[0].mxu0
    %565 = vdwg.mxu0
    %566 = vmax.xlane.f32.xlu0 %v560
    %v567 = vpop.xlane.xlu0 %566
    %568 = vmax.xlane.f32.xlu0 %v563
    %v569 = vpop.xlane.xlu0 %568
    %v570 = vsub.f32 %v560, %v567
    %v571 = vsub.f32 %v563, %v569
    %v572 = vmul.f32 %v570, 1.442695
    %v573 = vpow.pop %v572
    %v574 = vmul.f32 %v571, 1.442695
    %v575 = vpow.pop %v574
    %v576 = vpack.c.bf16 %v575, %v573
    %577 = vmatprep.subr.bf16.mxu0 0
    %578 = vmatpush1.bf16.msra.mxu0 %v517
    %579 = vmatprep.subr.bf16.mxu0 0
    %580 = vmatpush1.bf16.msra.mxu0 %v518
    %581 = vmatprep.subr.bf16.mxu0 0
    %582 = vmatpush1.bf16.msra.mxu0 %v519
    %583 = vmatprep.subr.bf16.mxu0 0
    %584 = vmatpush1.bf16.msra.mxu0 %v520
    %585 = vmatprep.subr.bf16.mxu0 0
    %586 = vmatpush1.bf16.msra.mxu0 %v521
    %587 = vmatprep.subr.bf16.mxu0 0
    %588 = vmatpush1.bf16.msra.mxu0 %v522
    %589 = vmatprep.subr.bf16.mxu0 0
    %590 = vmatpush1.bf16.msra.mxu0 %v523
    %591 = vmatprep.subr.bf16.mxu0 0
    %592 = vmatpush1.bf16.msra.mxu0 %v524
    %593 = vmatprep.subr.bf16.mxu0 0
    %594 = vmatpush1.bf16.msra.mxu0 0
    %595 = vmatprep.subr.bf16.mxu0 0
    %596 = vmatpush1.bf16.msra.mxu0 0
    %597 = vmatprep.subr.bf16.mxu0 0
    %598 = vmatpush1.bf16.msra.mxu0 0
    %599 = vmatprep.subr.bf16.mxu0 0
    %600 = vmatpush1.bf16.msra.mxu0 0
    %601 = vmatprep.subr.bf16.mxu0 0
    %602 = vmatpush1.bf16.msra.mxu0 0
    %603 = vmatprep.subr.bf16.mxu0 0
    %604 = vmatpush1.bf16.msra.mxu0 0
    %605 = vmatprep.subr.bf16.mxu0 0
    %606 = vmatpush1.bf16.msra.mxu0 0
    %607 = vmatprep.subr.bf16.mxu0 0
    %608 = vmatpush1.bf16.msra.mxu0 0
    %609 = vmatprep.mubr.bf16.mxu0 0
    %610 = vmatmul.mubr.bf16.gmra.mrb[0].mxu0 %v576
    %v611 = vpop.f32.mrb[0].mxu0
    %v612 = vadd.f32 0.0, %v611
    %v613 = vpop.f32.mrb[0].mxu0
    %v614 = vpop.f32.mrb[0].mxu0
    %v615 = vadd.f32 0.0, %v614
    %v616 = vpop.f32.mrb[0].mxu0
    %617 = vdwg.mxu0
    %618 = vmatprep.subr.bf16.mxu0 0
    %619 = vmatpush1.bf16.msra.mxu0 %v92
    %620 = vmatprep.subr.bf16.mxu0 0
    %621 = vmatpush1.bf16.msra.mxu0 %v93
    %622 = vmatprep.subr.bf16.mxu0 0
    %623 = vmatpush1.bf16.msra.mxu0 %v94
    %624 = vmatprep.subr.bf16.mxu0 0
    %625 = vmatpush1.bf16.msra.mxu0 %v95
    %626 = vmatprep.subr.bf16.mxu0 0
    %627 = vmatpush1.bf16.msra.mxu0 %v96
    %628 = vmatprep.subr.bf16.mxu0 0
    %629 = vmatpush1.bf16.msra.mxu0 %v97
    %630 = vmatprep.subr.bf16.mxu0 0
    %631 = vmatpush1.bf16.msra.mxu0 %v98
    %632 = vmatprep.subr.bf16.mxu0 0
    %633 = vmatpush1.bf16.msra.mxu0 %v99
    %634 = vmatprep.subr.bf16.mxu0 0
    %635 = vmatpush1.bf16.msra.mxu0 0
    %636 = vmatprep.subr.bf16.mxu0 0
    %637 = vmatpush1.bf16.msra.mxu0 0
    %638 = vmatprep.subr.bf16.mxu0 0
    %639 = vmatpush1.bf16.msra.mxu0 0
    %640 = vmatprep.subr.bf16.mxu0 0
    %641 = vmatpush1.bf16.msra.mxu0 0
    %642 = vmatprep.subr.bf16.mxu0 0
    %643 = vmatpush1.bf16.msra.mxu0 0
    %644 = vmatprep.subr.bf16.mxu0 0
    %645 = vmatpush1.bf16.msra.mxu0 0
    %646 = vmatprep.subr.bf16.mxu0 0
    %647 = vmatpush1.bf16.msra.mxu0 0
    %648 = vmatprep.subr.bf16.mxu0 0
    %649 = vmatpush1.bf16.msra.mxu0 0
    %650 = vmatprep.mubr.bf16.mxu0 0
    %651 = vmatmul.mubr.bf16.gmra.mrb[0].mxu0 %v576
    %v652 = vpop.f32.mrb[0].mxu0
    %v653 = vadd.f32 0.0, %v652
    %v654 = vpop.f32.mrb[0].mxu0
    %v655 = vpop.f32.mrb[0].mxu0
    %v656 = vadd.f32 0.0, %v655
    %v657 = vpop.f32.mrb[0].mxu0
    %658 = vdwg.mxu0
    %v659 = vrcp.pop %v653
    %v660 = vmul.f32 %v612, %v659
    %v661 = vrcp.pop %v656
    %v662 = vmul.f32 %v615, %v661
    %v663 = vpack.c.bf16 %v233, %v230
    %v664 = vmul.f32 %v350, %v76
    %v665 = vmul.f32 %v353, %v77
    %v666 = vmul.f32 %v350, %v78
    %v667 = vmul.f32 %v353, %v79
    %v668 = vmul.f32 %v350, %v80
    %v669 = vmul.f32 %v353, %v81
    %v670 = vmul.f32 %v350, %v82
    %v671 = vmul.f32 %v353, %v83
    %v672 = vmul.f32 %v350, %v84
    %v673 = vmul.f32 %v353, %v85
    %v674 = vmul.f32 %v350, %v86
    %v675 = vmul.f32 %v353, %v87
    %v676 = vmul.f32 %v350, %v88
    %v677 = vmul.f32 %v353, %v89
    %v678 = vmul.f32 %v350, %v90
    %v679 = vmul.f32 %v353, %v91
    %v680 = vpack.c.bf16 %v665, %v664
    %v681 = vpack.c.bf16 %v667, %v666
    %v682 = vpack.c.bf16 %v669, %v668
    %v683 = vpack.c.bf16 %v671, %v670
    %v684 = vpack.c.bf16 %v673, %v672
    %v685 = vpack.c.bf16 %v675, %v674
    %v686 = vpack.c.bf16 %v677, %v676
    %v687 = vpack.c.bf16 %v679, %v678
    %v688 = vmul.f32 %v470, %v76
    %v689 = vmul.f32 %v473, %v77
    %v690 = vmul.f32 %v470, %v78
    %v691 = vmul.f32 %v473, %v79
    %v692 = vmul.f32 %v470, %v80
    %v693 = vmul.f32 %v473, %v81
    %v694 = vmul.f32 %v470, %v82
    %v695 = vmul.f32 %v473, %v83
    %v696 = vmul.f32 %v470, %v84
    %v697 = vmul.f32 %v473, %v85
    %v698 = vmul.f32 %v470, %v86
    %v699 = vmul.f32 %v473, %v87
    %v700 = vmul.f32 %v470, %v88
    %v701 = vmul.f32 %v473, %v89
    %v702 = vmul.f32 %v470, %v90
    %v703 = vmul.f32 %v473, %v91
    %v704 = vpack.c.bf16 %v689, %v688
    %v705 = vpack.c.bf16 %v691, %v690
    %v706 = vpack.c.bf16 %v693, %v692
    %v707 = vpack.c.bf16 %v695, %v694
    %v708 = vpack.c.bf16 %v697, %v696
    %v709 = vpack.c.bf16 %v699, %v698
    %v710 = vpack.c.bf16 %v701, %v700
    %v711 = vpack.c.bf16 %v703, %v702
    %712 = vmatprep.subr.bf16.mxu0 0
    %713 = vmatpush1.bf16.xpose.msra.mxu0 %v680
    %714 = vmatprep.subr.bf16.mxu0 0
    %715 = vmatpush1.bf16.xpose.msra.mxu0 %v681
    %716 = vmatprep.subr.bf16.mxu0 0
    %717 = vmatpush1.bf16.xpose.msra.mxu0 %v682
    %718 = vmatprep.subr.bf16.mxu0 0
    %719 = vmatpush1.bf16.xpose.msra.mxu0 %v683
    %720 = vmatprep.subr.bf16.mxu0 0
    %721 = vmatpush1.bf16.xpose.msra.mxu0 %v684
    %722 = vmatprep.subr.bf16.mxu0 0
    %723 = vmatpush1.bf16.xpose.msra.mxu0 %v685
    %724 = vmatprep.subr.bf16.mxu0 0
    %725 = vmatpush1.bf16.xpose.msra.mxu0 %v686
    %726 = vmatprep.subr.bf16.mxu0 0
    %727 = vmatpush1.bf16.xpose.msra.mxu0 %v687
    %728 = vmatprep.subr.bf16.mxu0 0
    %729 = vmatpush1.bf16.xpose.msra.mxu0 0
    %730 = vmatprep.subr.bf16.mxu0 0
    %731 = vmatpush1.bf16.xpose.msra.mxu0 0
    %732 = vmatprep.subr.bf16.mxu0 0
    %733 = vmatpush1.bf16.xpose.msra.mxu0 0
    %734 = vmatprep.subr.bf16.mxu0 0
    %735 = vmatpush1.bf16.xpose.msra.mxu0 0
    %736 = vmatprep.subr.bf16.mxu0 0
    %737 = vmatpush1.bf16.xpose.msra.mxu0 0
    %738 = vmatprep.subr.bf16.mxu0 0
    %739 = vmatpush1.bf16.xpose.msra.mxu0 0
    %740 = vmatprep.subr.bf16.mxu0 0
    %741 = vmatpush1.bf16.xpose.msra.mxu0 0
    %742 = vmatprep.subr.bf16.mxu0 0
    %743 = vmatpush1.bf16.xpose.msra.mxu0 0
    %744 = vmatprep.mubr.bf16.mxu0 0
    %745 = vmatmul.mubr.bf16.gmra.mrb[0].mxu0 %v663
    %v746 = vpop.f32.mrb[0].mxu0
    %v747 = vadd.f32 0.0, %v746
    %v748 = vpop.f32.mrb[0].mxu0
    %v749 = vpop.f32.mrb[0].mxu0
    %v750 = vadd.f32 0.0, %v749
    %v751 = vpop.f32.mrb[0].mxu0
    %752 = vdwg.mxu0
    %753 = vmax.xlane.f32.xlu0 %v747
    %v754 = vpop.xlane.xlu0 %753
    %755 = vmax.xlane.f32.xlu0 %v750
    %v756 = vpop.xlane.xlu0 %755
    %v757 = vsub.f32 %v747, %v754
    %v758 = vsub.f32 %v750, %v756
    %v759 = vmul.f32 %v757, 1.442695
    %v760 = vpow.pop %v759
    %v761 = vmul.f32 %v758, 1.442695
    %v762 = vpow.pop %v761
    %v763 = vpack.c.bf16 %v762, %v760
    %764 = vmatprep.subr.bf16.mxu0 0
    %765 = vmatpush1.bf16.msra.mxu0 %v704
    %766 = vmatprep.subr.bf16.mxu0 0
    %767 = vmatpush1.bf16.msra.mxu0 %v705
    %768 = vmatprep.subr.bf16.mxu0 0
    %769 = vmatpush1.bf16.msra.mxu0 %v706
    %770 = vmatprep.subr.bf16.mxu0 0
    %771 = vmatpush1.bf16.msra.mxu0 %v707
    %772 = vmatprep.subr.bf16.mxu0 0
    %773 = vmatpush1.bf16.msra.mxu0 %v708
    %774 = vmatprep.subr.bf16.mxu0 0
    %775 = vmatpush1.bf16.msra.mxu0 %v709
    %776 = vmatprep.subr.bf16.mxu0 0
    %777 = vmatpush1.bf16.msra.mxu0 %v710
    %778 = vmatprep.subr.bf16.mxu0 0
    %779 = vmatpush1.bf16.msra.mxu0 %v711
    %780 = vmatprep.subr.bf16.mxu0 0
    %781 = vmatpush1.bf16.msra.mxu0 0
    %782 = vmatprep.subr.bf16.mxu0 0
    %783 = vmatpush1.bf16.msra.mxu0 0
    %784 = vmatprep.subr.bf16.mxu0 0
    %785 = vmatpush1.bf16.msra.mxu0 0
    %786 = vmatprep.subr.bf16.mxu0 0
    %787 = vmatpush1.bf16.msra.mxu0 0
    %788 = vmatprep.subr.bf16.mxu0 0
    %789 = vmatpush1.bf16.msra.mxu0 0
    %790 = vmatprep.subr.bf16.mxu0 0
    %791 = vmatpush1.bf16.msra.mxu0 0
    %792 = vmatprep.subr.bf16.mxu0 0
    %793 = vmatpush1.bf16.msra.mxu0 0
    %794 = vmatprep.subr.bf16.mxu0 0
    %795 = vmatpush1.bf16.msra.mxu0 0
    %796 = vmatprep.mubr.bf16.mxu0 0
    %797 = vmatmul.mubr.bf16.gmra.mrb[0].mxu0 %v763
    %v798 = vpop.f32.mrb[0].mxu0
    %v799 = vadd.f32 0.0, %v798
    %v800 = vpop.f32.mrb[0].mxu0
    %v801 = vpop.f32.mrb[0].mxu0
    %v802 = vadd.f32 0.0, %v801
    %v803 = vpop.f32.mrb[0].mxu0
    %804 = vdwg.mxu0
    %805 = vmatprep.subr.bf16.mxu0 0
    %806 = vmatpush1.bf16.msra.mxu0 %v92
    %807 = vmatprep.subr.bf16.mxu0 0
    %808 = vmatpush1.bf16.msra.mxu0 %v93
    %809 = vmatprep.subr.bf16.mxu0 0
    %810 = vmatpush1.bf16.msra.mxu0 %v94
    %811 = vmatprep.subr.bf16.mxu0 0
    %812 = vmatpush1.bf16.msra.mxu0 %v95
    %813 = vmatprep.subr.bf16.mxu0 0
    %814 = vmatpush1.bf16.msra.mxu0 %v96
    %815 = vmatprep.subr.bf16.mxu0 0
    %816 = vmatpush1.bf16.msra.mxu0 %v97
    %817 = vmatprep.subr.bf16.mxu0 0
    %818 = vmatpush1.bf16.msra.mxu0 %v98
    %819 = vmatprep.subr.bf16.mxu0 0
    %820 = vmatpush1.bf16.msra.mxu0 %v99
    %821 = vmatprep.subr.bf16.mxu0 0
    %822 = vmatpush1.bf16.msra.mxu0 0
    %823 = vmatprep.subr.bf16.mxu0 0
    %824 = vmatpush1.bf16.msra.mxu0 0
    %825 = vmatprep.subr.bf16.mxu0 0
    %826 = vmatpush1.bf16.msra.mxu0 0
    %827 = vmatprep.subr.bf16.mxu0 0
    %828 = vmatpush1.bf16.msra.mxu0 0
    %829 = vmatprep.subr.bf16.mxu0 0
    %830 = vmatpush1.bf16.msra.mxu0 0
    %831 = vmatprep.subr.bf16.mxu0 0
    %832 = vmatpush1.bf16.msra.mxu0 0
    %833 = vmatprep.subr.bf16.mxu0 0
    %834 = vmatpush1.bf16.msra.mxu0 0
    %835 = vmatprep.subr.bf16.mxu0 0
    %836 = vmatpush1.bf16.msra.mxu0 0
    %837 = vmatprep.mubr.bf16.mxu0 0
    %838 = vmatmul.mubr.bf16.gmra.mrb[0].mxu0 %v763
    %v839 = vpop.f32.mrb[0].mxu0
    %v840 = vadd.f32 0.0, %v839
    %v841 = vpop.f32.mrb[0].mxu0
    %v842 = vpop.f32.mrb[0].mxu0
    %v843 = vadd.f32 0.0, %v842
    %v844 = vpop.f32.mrb[0].mxu0
    %845 = vdwg.mxu0
    %v846 = vrcp.pop %v840
    %v847 = vmul.f32 %v799, %v846
    %v848 = vrcp.pop %v843
    %v849 = vmul.f32 %v802, %v848
    %v850 = vpack.c.bf16 %v662, %v660
    %v851 = vpack.c.bf16 %v849, %v847
    %v852 = vld [vmem:[%s11] sm:$0xf]
    %v853 = vld [vmem:[%s11 + $0x4] sm:$0xf]
    %v854 = vld [vmem:[%s11 + $0x8] sm:$0xf]
    %v855 = vld [vmem:[%s11 + $0xc] sm:$0xf]
    %v856 = vld [vmem:[%s11 + $0x10] sm:$0xf]
    %v857 = vld [vmem:[%s11 + $0x14] sm:$0xf]
    %v858 = vld [vmem:[%s11 + $0x18] sm:$0xf]
    %v859 = vld [vmem:[%s11 + $0x1c] sm:$0xf]
    %v860 = vld [vmem:[%s11 + $0x20] sm:$0xf]
    %v861 = vld [vmem:[%s11 + $0x24] sm:$0xf]
    %v862 = vld [vmem:[%s11 + $0x28] sm:$0xf]
    %v863 = vld [vmem:[%s11 + $0x2c] sm:$0xf]
    %v864 = vld [vmem:[%s11 + $0x30] sm:$0xf]
    %v865 = vld [vmem:[%s11 + $0x34] sm:$0xf]
    %v866 = vld [vmem:[%s11 + $0x38] sm:$0xf]
    %v867 = vld [vmem:[%s11 + $0x3c] sm:$0xf]
    %v868 = vld [vmem:[%s12] sm:$0x1]
    %v870 = vlaneseq
    %v871 = vshrl.u32 %v870, 7
    %v872 = vsub.s32 0, %v871
    %v873 = vrot.slane %v868, %v872
    %v891 = vunpack.c.l.b16 %v852
    %v892 = vunpack.c.l.b16 %v853
    %v893 = vunpack.c.l.b16 %v854
    %v894 = vunpack.c.l.b16 %v855
    %v895 = vunpack.c.l.b16 %v856
    %v896 = vunpack.c.l.b16 %v857
    %v897 = vunpack.c.l.b16 %v858
    %v898 = vunpack.c.l.b16 %v859
    %v899 = vunpack.c.l.b16 %v860
    %v900 = vunpack.c.l.b16 %v861
    %v901 = vunpack.c.l.b16 %v862
    %v902 = vunpack.c.l.b16 %v863
    %v903 = vunpack.c.l.b16 %v864
    %v904 = vunpack.c.l.b16 %v865
    %v905 = vunpack.c.l.b16 %v866
    %v906 = vunpack.c.l.b16 %v867
    %v907 = vpack.c.b16 %v892, %v891
    %v908 = vpack.c.b16 %v894, %v893
    %v909 = vpack.c.b16 %v896, %v895
    %v910 = vpack.c.b16 %v898, %v897
    %v911 = vpack.c.b16 %v900, %v899
    %v912 = vpack.c.b16 %v902, %v901
    %v913 = vpack.c.b16 %v904, %v903
    %v914 = vpack.c.b16 %v906, %v905
    %923 = vmatprep.subr.bf16.mxu0 0
    %924 = vmatpush1.bf16.msra.mxu0 %v907
    %925 = vmatprep.subr.bf16.mxu0 0
    %926 = vmatpush1.bf16.msra.mxu0 %v908
    %927 = vmatprep.subr.bf16.mxu0 0
    %928 = vmatpush1.bf16.msra.mxu0 %v909
    %929 = vmatprep.subr.bf16.mxu0 0
    %930 = vmatpush1.bf16.msra.mxu0 %v910
    %931 = vmatprep.subr.bf16.mxu0 0
    %932 = vmatpush1.bf16.msra.mxu0 %v911
    %933 = vmatprep.subr.bf16.mxu0 0
    %934 = vmatpush1.bf16.msra.mxu0 %v912
    %935 = vmatprep.subr.bf16.mxu0 0
    %936 = vmatpush1.bf16.msra.mxu0 %v913
    %937 = vmatprep.subr.bf16.mxu0 0
    %938 = vmatpush1.bf16.msra.mxu0 %v914
    %939 = vmatprep.subr.bf16.mxu0 0
    %940 = vmatpush1.bf16.msra.mxu0 0
    %941 = vmatprep.subr.bf16.mxu0 0
    %942 = vmatpush1.bf16.msra.mxu0 0
    %943 = vmatprep.subr.bf16.mxu0 0
    %944 = vmatpush1.bf16.msra.mxu0 0
    %945 = vmatprep.subr.bf16.mxu0 0
    %946 = vmatpush1.bf16.msra.mxu0 0
    %947 = vmatprep.subr.bf16.mxu0 0
    %948 = vmatpush1.bf16.msra.mxu0 0
    %949 = vmatprep.subr.bf16.mxu0 0
    %950 = vmatpush1.bf16.msra.mxu0 0
    %951 = vmatprep.subr.bf16.mxu0 0
    %952 = vmatpush1.bf16.msra.mxu0 0
    %953 = vmatprep.subr.bf16.mxu0 0
    %954 = vmatpush1.bf16.msra.mxu0 0
    %955 = vmatprep.mubr.bf16.mxu0 0
    %956 = vmatmul.mubr.bf16.gmra.mrb[0].mxu0 %v850
    %v957 = vpop.f32.mrb[0].mxu0
    %v958 = vadd.f32 %v873, %v957
    %v959 = vpop.f32.mrb[0].mxu0
    %v960 = vpop.f32.mrb[0].mxu0
    %v961 = vadd.f32 %v873, %v960
    %v962 = vpop.f32.mrb[0].mxu0
    %963 = vmatprep.mubr.bf16.mxu0 0
    %964 = vmatmul.mubr.bf16.gmra.mrb[0].mxu0 %v851
    %v965 = vpop.f32.mrb[0].mxu0
    %v966 = vadd.f32 %v873, %v965
    %v967 = vpop.f32.mrb[0].mxu0
    %v968 = vpop.f32.mrb[0].mxu0
    %v969 = vadd.f32 %v873, %v968
    %v970 = vpop.f32.mrb[0].mxu0
    %971 = vdwg.mxu0
    %v972 = vadd.f32 %v100, %v958
    %v973 = vadd.f32 %v101, %v961
    %v974 = vadd.f32 %v102, %v966
    %v975 = vadd.f32 %v103, %v969
    %v976 = vld [vmem:[%s13] sm:$0x1]
    %v977 = vld [vmem:[%s14] sm:$0x1]
    %978 = vadd.xlane.f32.xlu0 %v972
    %v979 = vpop.xlane.xlu0 %978
    %980 = vadd.xlane.f32.xlu0 %v973
    %v981 = vpop.xlane.xlu0 %980
    %982 = vadd.xlane.f32.xlu0 %v974
    %v983 = vpop.xlane.xlu0 %982
    %984 = vadd.xlane.f32.xlu0 %v975
    %v985 = vpop.xlane.xlu0 %984
    %v986 = vrcp.pop 128.0
    %v987 = vmul.f32 %v979, %v986
    %v988 = vmul.f32 %v981, %v986
    %v989 = vmul.f32 %v983, %v986
    %v990 = vmul.f32 %v985, %v986
    %v991 = vsub.f32 %v972, %v987
    %v992 = vsub.f32 %v973, %v988
    %v993 = vsub.f32 %v974, %v989
    %v994 = vsub.f32 %v975, %v990
    %v995 = vmul.f32 %v991, %v991
    %v996 = vmul.f32 %v992, %v992
    %v997 = vmul.f32 %v993, %v993
    %v998 = vmul.f32 %v994, %v994
    %999 = vadd.xlane.f32.xlu0 %v995
    %v1000 = vpop.xlane.xlu0 %999
    %1001 = vadd.xlane.f32.xlu0 %v996
    %v1002 = vpop.xlane.xlu0 %1001
    %1003 = vadd.xlane.f32.xlu0 %v997
    %v1004 = vpop.xlane.xlu0 %1003
    %1005 = vadd.xlane.f32.xlu0 %v998
    %v1006 = vpop.xlane.xlu0 %1005
    %v1007 = vmul.f32 %v1000, %v986
    %v1008 = vmul.f32 %v1002, %v986
    %v1009 = vmul.f32 %v1004, %v986
    %v1010 = vmul.f32 %v1006, %v986
    %v1011 = vadd.f32 %v1007, 1e-05
    %v1012 = vadd.f32 %v1008, 1e-05
    %v1013 = vadd.f32 %v1009, 1e-05
    %v1014 = vadd.f32 %v1010, 1e-05
    %v1015 = vrsqrt.pop %v1011
    %v1016 = vrsqrt.pop %v1012
    %v1017 = vrsqrt.pop %v1013
    %v1018 = vrsqrt.pop %v1014
    %v1019 = vmul.f32 %v991, %v1015
    %v1020 = vmul.f32 %v992, %v1016
    %v1021 = vmul.f32 %v993, %v1017
    %v1022 = vmul.f32 %v994, %v1018
    %v1024 = vlaneseq
    %v1025 = vshrl.u32 %v1024, 7
    %v1026 = vsub.s32 0, %v1025
    %v1027 = vrot.slane %v976, %v1026
    %v1029 = vmul.f32 %v1019, %v1027
    %v1030 = vmul.f32 %v1020, %v1027
    %v1031 = vmul.f32 %v1021, %v1027
    %v1032 = vmul.f32 %v1022, %v1027
    %v1034 = vlaneseq
    %v1035 = vshrl.u32 %v1034, 7
    %v1036 = vsub.s32 0, %v1035
    %v1037 = vrot.slane %v977, %v1036
    %v1039 = vadd.f32 %v1029, %v1037
    %v1040 = vadd.f32 %v1030, %v1037
    %v1041 = vadd.f32 %v1031, %v1037
    %v1042 = vadd.f32 %v1032, %v1037
    %v1043 = vld [vmem:[%s2] sm:$0xff]
    %v1044 = vld [vmem:[%s2 + $0x8] sm:$0xff]
    %v1045 = vld [vmem:[%s2 + $0x10] sm:$0xff]
    %v1046 = vld [vmem:[%s2 + $0x18] sm:$0xff]
    %v1047 = vld [vmem:[%s3] sm:$0xff]
    %v1048 = vld [vmem:[%s3 + $0x8] sm:$0xff]
    %v1049 = vld [vmem:[%s3 + $0x10] sm:$0xff]
    %v1050 = vld [vmem:[%s3 + $0x18] sm:$0xff]
    %1052 = vset.pattern.permute.xlu0 0
    %1053 = vperm.xlu0 %1052, %v1047
    %v1054 = vpop.permute.xlu0 %1053
    %1057 = vset.pattern.permute.xlu0 0
    %1058 = vperm.xlu0 %1057, %v1048
    %v1059 = vpop.permute.xlu0 %1058
    %1062 = vset.pattern.permute.xlu0 0
    %1063 = vperm.xlu0 %1062, %v1049
    %v1064 = vpop.permute.xlu0 %1063
    %1067 = vset.pattern.permute.xlu0 0
    %1068 = vperm.xlu0 %1067, %v1050
    %v1069 = vpop.permute.xlu0 %1068
    %v1071 = vmul.f32 %v1043, %v1054
    %v1072 = vmul.f32 %v1044, %v1059
    %v1073 = vmul.f32 %v1045, %v1064
    %v1074 = vmul.f32 %v1046, %v1069
    %s1075 = scalar_lea.vmem %s2, 32
    %v1076 = vld [vmem:[%s1075] sm:$0xff]
    %v1077 = vld [vmem:[%s1075 + $0x8] sm:$0xff]
    %v1078 = vld [vmem:[%s1075 + $0x10] sm:$0xff]
    %v1079 = vld [vmem:[%s1075 + $0x18] sm:$0xff]
    %1080 = vset.pattern.permute.xlu0 1
    %1081 = vperm.xlu0 %1080, %v1047
    %v1082 = vpop.permute.xlu0 %1081
    %1084 = vset.pattern.permute.xlu0 1
    %1085 = vperm.xlu0 %1084, %v1048
    %v1086 = vpop.permute.xlu0 %1085
    %1088 = vset.pattern.permute.xlu0 1
    %1089 = vperm.xlu0 %1088, %v1049
    %v1090 = vpop.permute.xlu0 %1089
    %1092 = vset.pattern.permute.xlu0 1
    %1093 = vperm.xlu0 %1092, %v1050
    %v1094 = vpop.permute.xlu0 %1093
    %v1096 = vmul.f32 %v1076, %v1082
    %v1097 = vmul.f32 %v1077, %v1086
    %v1098 = vmul.f32 %v1078, %v1090
    %v1099 = vmul.f32 %v1079, %v1094
    %v1100 = vadd.f32 %v1071, %v1096
    %v1101 = vadd.f32 %v1072, %v1097
    %v1102 = vadd.f32 %v1073, %v1098
    %v1103 = vadd.f32 %v1074, %v1099
    %v1104 = vadd.f32 %v1039, %v1100
    %v1105 = vadd.f32 %v1040, %v1101
    %v1106 = vadd.f32 %v1041, %v1102
    %v1107 = vadd.f32 %v1042, %v1103
    %v1108 = vld [vmem:[%s15] sm:$0x1]
    %v1109 = vld [vmem:[%s16] sm:$0x1]
    %1110 = vadd.xlane.f32.xlu0 %v1104
    %v1111 = vpop.xlane.xlu0 %1110
    %1112 = vadd.xlane.f32.xlu0 %v1105
    %v1113 = vpop.xlane.xlu0 %1112
    %1114 = vadd.xlane.f32.xlu0 %v1106
    %v1115 = vpop.xlane.xlu0 %1114
    %1116 = vadd.xlane.f32.xlu0 %v1107
    %v1117 = vpop.xlane.xlu0 %1116
    %v1118 = vmul.f32 %v1111, %v986
    %v1119 = vmul.f32 %v1113, %v986
    %v1120 = vmul.f32 %v1115, %v986
    %v1121 = vmul.f32 %v1117, %v986
    %v1122 = vsub.f32 %v1104, %v1118
    %v1123 = vsub.f32 %v1105, %v1119
    %v1124 = vsub.f32 %v1106, %v1120
    %v1125 = vsub.f32 %v1107, %v1121
    %v1126 = vmul.f32 %v1122, %v1122
    %v1127 = vmul.f32 %v1123, %v1123
    %v1128 = vmul.f32 %v1124, %v1124
    %v1129 = vmul.f32 %v1125, %v1125
    %1130 = vadd.xlane.f32.xlu0 %v1126
    %v1131 = vpop.xlane.xlu0 %1130
    %1132 = vadd.xlane.f32.xlu0 %v1127
    %v1133 = vpop.xlane.xlu0 %1132
    %1134 = vadd.xlane.f32.xlu0 %v1128
    %v1135 = vpop.xlane.xlu0 %1134
    %1136 = vadd.xlane.f32.xlu0 %v1129
    %v1137 = vpop.xlane.xlu0 %1136
    %v1138 = vmul.f32 %v1131, %v986
    %v1139 = vmul.f32 %v1133, %v986
    %v1140 = vmul.f32 %v1135, %v986
    %v1141 = vmul.f32 %v1137, %v986
    %v1142 = vadd.f32 %v1138, 1e-05
    %v1143 = vadd.f32 %v1139, 1e-05
    %v1144 = vadd.f32 %v1140, 1e-05
    %v1145 = vadd.f32 %v1141, 1e-05
    %v1146 = vrsqrt.pop %v1142
    %v1147 = vrsqrt.pop %v1143
    %v1148 = vrsqrt.pop %v1144
    %v1149 = vrsqrt.pop %v1145
    %v1150 = vmul.f32 %v1122, %v1146
    %v1151 = vmul.f32 %v1123, %v1147
    %v1152 = vmul.f32 %v1124, %v1148
    %v1153 = vmul.f32 %v1125, %v1149
    %v1155 = vlaneseq
    %v1156 = vshrl.u32 %v1155, 7
    %v1157 = vsub.s32 0, %v1156
    %v1158 = vrot.slane %v1108, %v1157
    %v1160 = vmul.f32 %v1150, %v1158
    %v1161 = vmul.f32 %v1151, %v1158
    %v1162 = vmul.f32 %v1152, %v1158
    %v1163 = vmul.f32 %v1153, %v1158
    %v1165 = vlaneseq
    %v1166 = vshrl.u32 %v1165, 7
    %v1167 = vsub.s32 0, %v1166
    %v1168 = vrot.slane %v1109, %v1167
    %v1170 = vadd.f32 %v1160, %v1168
    %v1171 = vadd.f32 %v1161, %v1168
    %v1172 = vadd.f32 %v1162, %v1168
    %v1173 = vadd.f32 %v1163, %v1168
    %v1174 = vpack.c.bf16 %v1171, %v1170
    %v1175 = vpack.c.bf16 %v1173, %v1172
    %v1176 = vld [vmem:[%s17] sm:$0xff]
    %v1177 = vld [vmem:[%s17 + $0x8] sm:$0xff]
    %v1178 = vld [vmem:[%s17 + $0x10] sm:$0xff]
    %v1179 = vld [vmem:[%s17 + $0x18] sm:$0xff]
    %v1180 = vld [vmem:[%s17 + $0x20] sm:$0xff]
    %v1181 = vld [vmem:[%s17 + $0x28] sm:$0xff]
    %v1182 = vld [vmem:[%s17 + $0x30] sm:$0xff]
    %v1183 = vld [vmem:[%s17 + $0x38] sm:$0xff]
    %v1184 = vld [vmem:[%s17 + $0x40] sm:$0xff]
    %v1185 = vld [vmem:[%s17 + $0x48] sm:$0xff]
    %v1186 = vld [vmem:[%s17 + $0x50] sm:$0xff]
    %v1187 = vld [vmem:[%s17 + $0x58] sm:$0xff]
    %v1188 = vld [vmem:[%s17 + $0x60] sm:$0xff]
    %v1189 = vld [vmem:[%s17 + $0x68] sm:$0xff]
    %v1190 = vld [vmem:[%s17 + $0x70] sm:$0xff]
    %v1191 = vld [vmem:[%s17 + $0x78] sm:$0xff]
    %v1192 = vld [vmem:[%s18] sm:$0x3]
    %v1194 = vlaneseq
    %v1195 = vshrl.u32 %v1194, 7
    %v1196 = vsub.s32 0, %v1195
    %v1197 = vrot.slane %v1192, %v1196
    %v1198 = vlaneseq
    %v1199 = vshrl.u32 %v1198, 7
    %v1200 = vsub.s32 1, %v1199
    %v1201 = vrot.slane %v1192, %v1200
    %v1220 = vunpack.c.l.b16 %v1176
    %v1221 = vunpack.c.h.b16 %v1176
    %v1222 = vunpack.c.l.b16 %v1177
    %v1223 = vunpack.c.h.b16 %v1177
    %v1224 = vunpack.c.l.b16 %v1178
    %v1225 = vunpack.c.h.b16 %v1178
    %v1226 = vunpack.c.l.b16 %v1179
    %v1227 = vunpack.c.h.b16 %v1179
    %v1228 = vunpack.c.l.b16 %v1180
    %v1229 = vunpack.c.h.b16 %v1180
    %v1230 = vunpack.c.l.b16 %v1181
    %v1231 = vunpack.c.h.b16 %v1181
    %v1232 = vunpack.c.l.b16 %v1182
    %v1233 = vunpack.c.h.b16 %v1182
    %v1234 = vunpack.c.l.b16 %v1183
    %v1235 = vunpack.c.h.b16 %v1183
    %v1236 = vunpack.c.l.b16 %v1184
    %v1237 = vunpack.c.h.b16 %v1184
    %v1238 = vunpack.c.l.b16 %v1185
    %v1239 = vunpack.c.h.b16 %v1185
    %v1240 = vunpack.c.l.b16 %v1186
    %v1241 = vunpack.c.h.b16 %v1186
    %v1242 = vunpack.c.l.b16 %v1187
    %v1243 = vunpack.c.h.b16 %v1187
    %v1244 = vunpack.c.l.b16 %v1188
    %v1245 = vunpack.c.h.b16 %v1188
    %v1246 = vunpack.c.l.b16 %v1189
    %v1247 = vunpack.c.h.b16 %v1189
    %v1248 = vunpack.c.l.b16 %v1190
    %v1249 = vunpack.c.h.b16 %v1190
    %v1250 = vunpack.c.l.b16 %v1191
    %v1251 = vunpack.c.h.b16 %v1191
    %v1252 = vpack.c.b16 %v1222, %v1220
    %v1253 = vpack.c.b16 %v1223, %v1221
    %v1254 = vpack.c.b16 %v1226, %v1224
    %v1255 = vpack.c.b16 %v1227, %v1225
    %v1256 = vpack.c.b16 %v1230, %v1228
    %v1257 = vpack.c.b16 %v1231, %v1229
    %v1258 = vpack.c.b16 %v1234, %v1232
    %v1259 = vpack.c.b16 %v1235, %v1233
    %v1260 = vpack.c.b16 %v1238, %v1236
    %v1261 = vpack.c.b16 %v1239, %v1237
    %v1262 = vpack.c.b16 %v1242, %v1240
    %v1263 = vpack.c.b16 %v1243, %v1241
    %v1264 = vpack.c.b16 %v1246, %v1244
    %v1265 = vpack.c.b16 %v1247, %v1245
    %v1266 = vpack.c.b16 %v1250, %v1248
    %v1267 = vpack.c.b16 %v1251, %v1249
    %1284 = vmatprep.subr.bf16.mxu0 %v1253
    %1285 = vmatpush1.bf16.msra.mxu0 %v1252
    %1286 = vmatprep.subr.bf16.mxu0 %v1255
    %1287 = vmatpush1.bf16.msra.mxu0 %v1254
    %1288 = vmatprep.subr.bf16.mxu0 %v1257
    %1289 = vmatpush1.bf16.msra.mxu0 %v1256
    %1290 = vmatprep.subr.bf16.mxu0 %v1259
    %1291 = vmatpush1.bf16.msra.mxu0 %v1258
    %1292 = vmatprep.subr.bf16.mxu0 %v1261
    %1293 = vmatpush1.bf16.msra.mxu0 %v1260
    %1294 = vmatprep.subr.bf16.mxu0 %v1263
    %1295 = vmatpush1.bf16.msra.mxu0 %v1262
    %1296 = vmatprep.subr.bf16.mxu0 %v1265
    %1297 = vmatpush1.bf16.msra.mxu0 %v1264
    %1298 = vmatprep.subr.bf16.mxu0 %v1267
    %1299 = vmatpush1.bf16.msra.mxu0 %v1266
    %1300 = vmatprep.subr.bf16.mxu0 0
    %1301 = vmatpush1.bf16.msra.mxu0 0
    %1302 = vmatprep.subr.bf16.mxu0 0
    %1303 = vmatpush1.bf16.msra.mxu0 0
    %1304 = vmatprep.subr.bf16.mxu0 0
    %1305 = vmatpush1.bf16.msra.mxu0 0
    %1306 = vmatprep.subr.bf16.mxu0 0
    %1307 = vmatpush1.bf16.msra.mxu0 0
    %1308 = vmatprep.subr.bf16.mxu0 0
    %1309 = vmatpush1.bf16.msra.mxu0 0
    %1310 = vmatprep.subr.bf16.mxu0 0
    %1311 = vmatpush1.bf16.msra.mxu0 0
    %1312 = vmatprep.subr.bf16.mxu0 0
    %1313 = vmatpush1.bf16.msra.mxu0 0
    %1314 = vmatprep.subr.bf16.mxu0 0
    %1315 = vmatpush1.bf16.msra.mxu0 0
    %1316 = vmatprep.mubr.bf16.mxu0 0
    %1317 = vmatmul.mubr.bf16.gmra.mrb[0].mxu0 %v1174
    %v1318 = vpop.f32.mrb[0].mxu0
    %v1319 = vadd.f32 %v1197, %v1318
    %v1320 = vpop.f32.mrb[0].mxu0
    %v1321 = vadd.f32 %v1201, %v1320
    %v1322 = vpop.f32.mrb[0].mxu0
    %v1323 = vadd.f32 %v1197, %v1322
    %v1324 = vpop.f32.mrb[0].mxu0
    %v1325 = vadd.f32 %v1201, %v1324
    %1326 = vmatprep.mubr.bf16.mxu0 0
    %1327 = vmatmul.mubr.bf16.gmra.mrb[0].mxu0 %v1175
    %v1328 = vpop.f32.mrb[0].mxu0
    %v1329 = vadd.f32 %v1197, %v1328
    %v1330 = vpop.f32.mrb[0].mxu0
    %v1331 = vadd.f32 %v1201, %v1330
    %v1332 = vpop.f32.mrb[0].mxu0
    %v1333 = vadd.f32 %v1197, %v1332
    %v1334 = vpop.f32.mrb[0].mxu0
    %v1335 = vadd.f32 %v1201, %v1334
    %1336 = vdwg.mxu0
    %v1337 = vmax.f32 %v1319, 0.0
    %v1338 = vmax.f32 %v1321, 0.0
    %v1339 = vmax.f32 %v1323, 0.0
    %v1340 = vmax.f32 %v1325, 0.0
    %v1341 = vmax.f32 %v1329, 0.0
    %v1342 = vmax.f32 %v1331, 0.0
    %v1343 = vmax.f32 %v1333, 0.0
    %v1344 = vmax.f32 %v1335, 0.0
    %v1345 = vpack.c.bf16 %v1339, %v1337
    %v1346 = vpack.c.bf16 %v1340, %v1338
    %v1347 = vpack.c.bf16 %v1343, %v1341
    %v1348 = vpack.c.bf16 %v1344, %v1342
    %v1349 = vld [vmem:[%s19] sm:$0xf]
    %v1350 = vld [vmem:[%s19 + $0x4] sm:$0xf]
    %v1351 = vld [vmem:[%s19 + $0x8] sm:$0xf]
    %v1352 = vld [vmem:[%s19 + $0xc] sm:$0xf]
    %v1353 = vld [vmem:[%s19 + $0x10] sm:$0xf]
    %v1354 = vld [vmem:[%s19 + $0x14] sm:$0xf]
    %v1355 = vld [vmem:[%s19 + $0x18] sm:$0xf]
    %v1356 = vld [vmem:[%s19 + $0x1c] sm:$0xf]
    %v1357 = vld [vmem:[%s19 + $0x20] sm:$0xf]
    %v1358 = vld [vmem:[%s19 + $0x24] sm:$0xf]
    %v1359 = vld [vmem:[%s19 + $0x28] sm:$0xf]
    %v1360 = vld [vmem:[%s19 + $0x2c] sm:$0xf]
    %v1361 = vld [vmem:[%s19 + $0x30] sm:$0xf]
    %v1362 = vld [vmem:[%s19 + $0x34] sm:$0xf]
    %v1363 = vld [vmem:[%s19 + $0x38] sm:$0xf]
    %v1364 = vld [vmem:[%s19 + $0x3c] sm:$0xf]
    %v1365 = vld [vmem:[%s19 + $0x40] sm:$0xf]
    %v1366 = vld [vmem:[%s19 + $0x44] sm:$0xf]
    %v1367 = vld [vmem:[%s19 + $0x48] sm:$0xf]
    %v1368 = vld [vmem:[%s19 + $0x4c] sm:$0xf]
    %v1369 = vld [vmem:[%s19 + $0x50] sm:$0xf]
    %v1370 = vld [vmem:[%s19 + $0x54] sm:$0xf]
    %v1371 = vld [vmem:[%s19 + $0x58] sm:$0xf]
    %v1372 = vld [vmem:[%s19 + $0x5c] sm:$0xf]
    %v1373 = vld [vmem:[%s19 + $0x60] sm:$0xf]
    %v1374 = vld [vmem:[%s19 + $0x64] sm:$0xf]
    %v1375 = vld [vmem:[%s19 + $0x68] sm:$0xf]
    %v1376 = vld [vmem:[%s19 + $0x6c] sm:$0xf]
    %v1377 = vld [vmem:[%s19 + $0x70] sm:$0xf]
    %v1378 = vld [vmem:[%s19 + $0x74] sm:$0xf]
    %v1379 = vld [vmem:[%s19 + $0x78] sm:$0xf]
    %v1380 = vld [vmem:[%s19 + $0x7c] sm:$0xf]
    %v1381 = vld [vmem:[%s20] sm:$0x1]
    %v1383 = vlaneseq
    %v1384 = vshrl.u32 %v1383, 7
    %v1385 = vsub.s32 0, %v1384
    %v1386 = vrot.slane %v1381, %v1385
    %v1420 = vunpack.c.l.b16 %v1349
    %v1421 = vunpack.c.l.b16 %v1350
    %v1422 = vunpack.c.l.b16 %v1351
    %v1423 = vunpack.c.l.b16 %v1352
    %v1424 = vunpack.c.l.b16 %v1353
    %v1425 = vunpack.c.l.b16 %v1354
    %v1426 = vunpack.c.l.b16 %v1355
    %v1427 = vunpack.c.l.b16 %v1356
    %v1428 = vunpack.c.l.b16 %v1357
    %v1429 = vunpack.c.l.b16 %v1358
    %v1430 = vunpack.c.l.b16 %v1359
    %v1431 = vunpack.c.l.b16 %v1360
    %v1432 = vunpack.c.l.b16 %v1361
    %v1433 = vunpack.c.l.b16 %v1362
    %v1434 = vunpack.c.l.b16 %v1363
    %v1435 = vunpack.c.l.b16 %v1364
    %v1436 = vunpack.c.l.b16 %v1365
    %v1437 = vunpack.c.l.b16 %v1366
    %v1438 = vunpack.c.l.b16 %v1367
    %v1439 = vunpack.c.l.b16 %v1368
    %v1440 = vunpack.c.l.b16 %v1369
    %v1441 = vunpack.c.l.b16 %v1370
    %v1442 = vunpack.c.l.b16 %v1371
    %v1443 = vunpack.c.l.b16 %v1372
    %v1444 = vunpack.c.l.b16 %v1373
    %v1445 = vunpack.c.l.b16 %v1374
    %v1446 = vunpack.c.l.b16 %v1375
    %v1447 = vunpack.c.l.b16 %v1376
    %v1448 = vunpack.c.l.b16 %v1377
    %v1449 = vunpack.c.l.b16 %v1378
    %v1450 = vunpack.c.l.b16 %v1379
    %v1451 = vunpack.c.l.b16 %v1380
    %v1452 = vpack.c.b16 %v1421, %v1420
    %v1453 = vpack.c.b16 %v1423, %v1422
    %v1454 = vpack.c.b16 %v1425, %v1424
    %v1455 = vpack.c.b16 %v1427, %v1426
    %v1456 = vpack.c.b16 %v1429, %v1428
    %v1457 = vpack.c.b16 %v1431, %v1430
    %v1458 = vpack.c.b16 %v1433, %v1432
    %v1459 = vpack.c.b16 %v1435, %v1434
    %v1460 = vpack.c.b16 %v1437, %v1436
    %v1461 = vpack.c.b16 %v1439, %v1438
    %v1462 = vpack.c.b16 %v1441, %v1440
    %v1463 = vpack.c.b16 %v1443, %v1442
    %v1464 = vpack.c.b16 %v1445, %v1444
    %v1465 = vpack.c.b16 %v1447, %v1446
    %v1466 = vpack.c.b16 %v1449, %v1448
    %v1467 = vpack.c.b16 %v1451, %v1450
    %1484 = vmatprep.subr.bf16.mxu0 0
    %1485 = vmatpush1.bf16.msra.mxu0 %v1452
    %1486 = vmatprep.subr.bf16.mxu0 0
    %1487 = vmatpush1.bf16.msra.mxu0 %v1453
    %1488 = vmatprep.subr.bf16.mxu0 0
    %1489 = vmatpush1.bf16.msra.mxu0 %v1454
    %1490 = vmatprep.subr.bf16.mxu0 0
    %1491 = vmatpush1.bf16.msra.mxu0 %v1455
    %1492 = vmatprep.subr.bf16.mxu0 0
    %1493 = vmatpush1.bf16.msra.mxu0 %v1456
    %1494 = vmatprep.subr.bf16.mxu0 0
    %1495 = vmatpush1.bf16.msra.mxu0 %v1457
    %1496 = vmatprep.subr.bf16.mxu0 0
    %1497 = vmatpush1.bf16.msra.mxu0 %v1458
    %1498 = vmatprep.subr.bf16.mxu0 0
    %1499 = vmatpush1.bf16.msra.mxu0 %v1459
    %1500 = vmatprep.subr.bf16.mxu0 0
    %1501 = vmatpush1.bf16.msra.mxu0 %v1460
    %1502 = vmatprep.subr.bf16.mxu0 0
    %1503 = vmatpush1.bf16.msra.mxu0 %v1461
    %1504 = vmatprep.subr.bf16.mxu0 0
    %1505 = vmatpush1.bf16.msra.mxu0 %v1462
    %1506 = vmatprep.subr.bf16.mxu0 0
    %1507 = vmatpush1.bf16.msra.mxu0 %v1463
    %1508 = vmatprep.subr.bf16.mxu0 0
    %1509 = vmatpush1.bf16.msra.mxu0 %v1464
    %1510 = vmatprep.subr.bf16.mxu0 0
    %1511 = vmatpush1.bf16.msra.mxu0 %v1465
    %1512 = vmatprep.subr.bf16.mxu0 0
    %1513 = vmatpush1.bf16.msra.mxu0 %v1466
    %1514 = vmatprep.subr.bf16.mxu0 0
    %1515 = vmatpush1.bf16.msra.mxu0 %v1467
    %1516 = vmatprep.mubr.bf16.mxu0 %v1346
    %1517 = vmatmul.mubr.bf16.gmra.mrb[0].mxu0 %v1345
    %v1518 = vpop.f32.mrb[0].mxu0
    %v1519 = vadd.f32 %v1386, %v1518
    %v1520 = vpop.f32.mrb[0].mxu0
    %v1521 = vpop.f32.mrb[0].mxu0
    %v1522 = vadd.f32 %v1386, %v1521
    %v1523 = vpop.f32.mrb[0].mxu0
    %1524 = vmatprep.mubr.bf16.mxu0 %v1348
    %1525 = vmatmul.mubr.bf16.gmra.mrb[0].mxu0 %v1347
    %v1526 = vpop.f32.mrb[0].mxu0
    %v1527 = vadd.f32 %v1386, %v1526
    %v1528 = vpop.f32.mrb[0].mxu0
    %v1529 = vpop.f32.mrb[0].mxu0
    %v1530 = vadd.f32 %v1386, %v1529
    %v1531 = vpop.f32.mrb[0].mxu0
    %1532 = vdwg.mxu0
    %v1533 = vadd.f32 %v1170, %v1519
    %v1534 = vadd.f32 %v1171, %v1522
    %v1535 = vadd.f32 %v1172, %v1527
    %v1536 = vadd.f32 %v1173, %v1530
    %v1537 = vld [vmem:[%s21] sm:$0x1]
    %v1538 = vld [vmem:[%s22] sm:$0x1]
    %1539 = vadd.xlane.f32.xlu0 %v1533
    %v1540 = vpop.xlane.xlu0 %1539
    %1541 = vadd.xlane.f32.xlu0 %v1534
    %v1542 = vpop.xlane.xlu0 %1541
    %1543 = vadd.xlane.f32.xlu0 %v1535
    %v1544 = vpop.xlane.xlu0 %1543
    %1545 = vadd.xlane.f32.xlu0 %v1536
    %v1546 = vpop.xlane.xlu0 %1545
    %v1547 = vmul.f32 %v1540, %v986
    %v1548 = vmul.f32 %v1542, %v986
    %v1549 = vmul.f32 %v1544, %v986
    %v1550 = vmul.f32 %v1546, %v986
    %v1551 = vsub.f32 %v1533, %v1547
    %v1552 = vsub.f32 %v1534, %v1548
    %v1553 = vsub.f32 %v1535, %v1549
    %v1554 = vsub.f32 %v1536, %v1550
    %v1555 = vmul.f32 %v1551, %v1551
    %v1556 = vmul.f32 %v1552, %v1552
    %v1557 = vmul.f32 %v1553, %v1553
    %v1558 = vmul.f32 %v1554, %v1554
    %1559 = vadd.xlane.f32.xlu0 %v1555
    %v1560 = vpop.xlane.xlu0 %1559
    %1561 = vadd.xlane.f32.xlu0 %v1556
    %v1562 = vpop.xlane.xlu0 %1561
    %1563 = vadd.xlane.f32.xlu0 %v1557
    %v1564 = vpop.xlane.xlu0 %1563
    %1565 = vadd.xlane.f32.xlu0 %v1558
    %v1566 = vpop.xlane.xlu0 %1565
    %v1567 = vmul.f32 %v1560, %v986
    %v1568 = vmul.f32 %v1562, %v986
    %v1569 = vmul.f32 %v1564, %v986
    %v1570 = vmul.f32 %v1566, %v986
    %v1571 = vadd.f32 %v1567, 1e-05
    %v1572 = vadd.f32 %v1568, 1e-05
    %v1573 = vadd.f32 %v1569, 1e-05
    %v1574 = vadd.f32 %v1570, 1e-05
    %v1575 = vrsqrt.pop %v1571
    %v1576 = vrsqrt.pop %v1572
    %v1577 = vrsqrt.pop %v1573
    %v1578 = vrsqrt.pop %v1574
    %v1579 = vmul.f32 %v1551, %v1575
    %v1580 = vmul.f32 %v1552, %v1576
    %v1581 = vmul.f32 %v1553, %v1577
    %v1582 = vmul.f32 %v1554, %v1578
    %v1584 = vlaneseq
    %v1585 = vshrl.u32 %v1584, 7
    %v1586 = vsub.s32 0, %v1585
    %v1587 = vrot.slane %v1537, %v1586
    %v1589 = vmul.f32 %v1579, %v1587
    %v1590 = vmul.f32 %v1580, %v1587
    %v1591 = vmul.f32 %v1581, %v1587
    %v1592 = vmul.f32 %v1582, %v1587
    %v1594 = vlaneseq
    %v1595 = vshrl.u32 %v1594, 7
    %v1596 = vsub.s32 0, %v1595
    %v1597 = vrot.slane %v1538, %v1596
    %v1599 = vadd.f32 %v1589, %v1597
    %v1600 = vadd.f32 %v1590, %v1597
    %v1601 = vadd.f32 %v1591, %v1597
    %v1602 = vadd.f32 %v1592, %v1597
    %1603 = vst [vmem:[#allocation2] sm:$0xff] %v1599
    %1604 = vst [vmem:[#allocation2 + $0x8] sm:$0xff] %v1600
    %1605 = vst [vmem:[#allocation2 + $0x10] sm:$0xff] %v1601
    %1606 = vst [vmem:[#allocation2 + $0x18] sm:$0xff] %v1602
    // Predicated region
    $region94: #{mvp_decoder_layer_forward.1} parent=1 // pred_check
      _
    $region95: #{mvp_decoder_layer_forward.1} parent=1 // pred_check_branch
      %1608 = sbr.rel (0) target = $region97
    $region96: #{mvp_decoder_layer_forward.1} parent=1 // pred_region
      %s1610 = ssub.s32 512, 512
      %1611 = vsyncadd [#allocation3], %s1610
      %s1612 = sshll.u32 [#allocation2], 4
      %s1613 = int_to_ptr.vmem [resolvable:$true] %s1612
      %1618 = dma.vmem_to_hbm [thread:$0]  %s1613, 512, %s23, [#allocation3], 128, 128, 8
    $region97: #{mvp_decoder_layer_forward.1} parent=1 // pred_fallthru
      _
    // Predicated region
    $region98: #{mvp_decoder_layer_forward.1} parent=1 // pred_check
      _
    $region99: #{mvp_decoder_layer_forward.1} parent=1 // pred_check_branch
      %1620 = sbr.rel (0) target = $region101
    $region100: #{mvp_decoder_layer_forward.1} parent=1 // pred_region
      %1621 = dma.done [#allocation3], 512
    $region101: #{mvp_decoder_layer_forward.1} parent=1 // pred_fallthru
      _
    %1622 = vsyncpa [#allocation3], 1

</llo_original>
